<compile_context>
chip_gen: v6e
topology: v6e:2x2x1
jax: 0.10.0
libtpu: 0.0.40
codegen_flags: <defaults>
</compile_context>

<pallas_src>
import functools

import jax
import jax.numpy as jnp
from jax.experimental import pallas as pl
from jax.experimental.pallas import tpu as pltpu


def _seq2space_kernel(xw_ref, wab_ref, bab_ref, wo_ref, bo_ref, out_ref, *, cin, depth):
    """One block of TB batch elements per grid step.

    xw_ref:  [TB, Sp, S*Cin]   (windowed input, lane-dense last dim)
    wab_ref: [Cin, 2*Cout]     (wa || wb fused, pre-transposed)
    bab_ref: [1, 2*Cout]
    wo_ref:  [Cout, Cout]      (head-interleave perm folded in, pre-transposed)
    bo_ref:  [1, Cout]
    out_ref: [TB, Cout]        (storage dtype)
    """
    tb, sp, s_cin = xw_ref.shape
    s_win = s_cin // cin
    cout = wo_ref.shape[0]

    # --- MaxPool1d(S): S-1 lane-sliced maxima over the flattened (S*Cin) last dim ---
    xw = xw_ref[...]
    pooled = xw[:, :, 0:cin]
    for s in range(1, s_win):
        pooled = jnp.maximum(pooled, xw[:, :, s * cin:(s + 1) * cin])
    pooled = pooled.reshape(tb * sp, cin)                       # [TB*Sp, Cin]

    # --- fused wa||wb linear: one MXU pass, M = TB*Sp rows, N = 2*Cout ---
    # TODO(synk): if profiling shows this dot MXU-bound with f32 storage, cast the
    # operands to bf16 here (keep preferred_element_type=f32).
    y = jnp.dot(pooled, wab_ref[...], preferred_element_type=jnp.float32)
    y = y + bab_ref[...].astype(jnp.float32)                    # [TB*Sp, 2*Cout] f32
    xa = y[:, :cout].reshape(tb, sp, cout)
    xb = y[:, cout:].reshape(tb, sp, cout)

    # --- softmax over the pooled-seq axis, per (batch, head, depth) column, in f32 ---
    m = jnp.max(xa, axis=1, keepdims=True)
    e = jnp.exp(xa - m)
    p = e * pl.reciprocal(jnp.sum(e, axis=1, keepdims=True), approx=True)  # [TB, Sp, Cout]

    # --- looped_matmul:
    #   xab[b, c] = sum_s (p[b,s,c] - p[b,(s - c%depth)%Sp, c]) * xb[b,s,c]
    # Build ONE p_shifted tensor via per-shift selects, then a single mul + reduce
    # (instead of depth-1 full multiplies and depth-1 cross-sublane reductions).
    shift_of_col = jax.lax.broadcasted_iota(jnp.int32, (1, 1, cout), 2) % depth
    p_shifted = p                                               # shift 0 -> diff column == 0
    for i in range(1, depth):                                   # static, small (= Cout//heads)
        # TODO(synk): pltpu.roll(p, i, axis=1) would pin this rotation to the XLU slot;
        # jnp.roll (static shift -> two sublane slices + concat) is kept because
        # second-minor-axis rotate support varies across Mosaic versions, and at Sp<=8
        # the operand is a single vreg group either way.
        p_shifted = jnp.where(shift_of_col == i, jnp.roll(p, i, axis=1), p_shifted)
    xab = jnp.sum((p - p_shifted) * xb, axis=1)                 # [TB, Cout]

    # --- final linear (torch split/cat channel permutation folded into wo_ref) ---
    out = jnp.dot(xab.astype(wo_ref.dtype), wo_ref[...],
                  preferred_element_type=jnp.float32)
    out = out + bo_ref[...].astype(jnp.float32)
    out_ref[...] = out.astype(out_ref.dtype)


def _round_up(n, m):
    return -(-n // m) * m


def _sublane_align(itemsize):
    return {4: 8, 2: 16, 1: 32}.get(int(itemsize), 8)


def _tpu_gen_info():
    """(num_tensorcores, vmem_limit_bytes) — generation-aware, conservative on unknowns."""
    kind = ""
    try:
        kind = jax.devices()[0].device_kind.lower()
    except Exception:
        pass
    if "v7" in kind or "7x" in kind:
        return 2, 48 * 1024 * 1024            # v7x: 2 TCs, 64 MiB VMEM per TC
    if "v4" in kind or "v5" in kind or "v6" in kind:
        return 1, 96 * 1024 * 1024            # v5e/v6e: 1 TC, 128 MiB VMEM
    return 1, 48 * 1024 * 1024                # unknown: safe everywhere


def _pick_batch_block(B, Sp, lane_in, cin, cout, itemsize, *, num_tc, vmem_budget):
    """Largest divisor-of-B batch block whose (8,128)-tile-padded VMEM footprint fits
    the budget and keeps the output block sublane-aligned. On multi-TC chips prefer
    >= num_tc grid steps so every core gets work; on 1-TC chips prefer the single
    largest block (each extra grid step is ~0.35us of pure pipeline overhead)."""
    sub_in = _sublane_align(itemsize)

    # tile-padded per-batch-element bytes
    per_batch = 2 * _round_up(Sp, sub_in) * _round_up(lane_in, 128) * itemsize  # xw (x2 buf)
    per_batch += 2 * _round_up(Sp, 8) * _round_up(2 * cout, 128) * 4            # fused-linear out
    per_batch += 7 * _round_up(Sp, 8) * _round_up(cout, 128) * 4                # xa/xb/p/p_shifted/...
    per_batch += 2 * 8 * _round_up(cout, 128) * 4                               # out block (x2 buf)

    # grid-invariant weights/biases (double-buffered by default)
    fixed = 2 * (_round_up(cin, sub_in) * _round_up(2 * cout, 128)
                 + _round_up(cout, sub_in) * _round_up(cout, 128)
                 + 2 * 8 * 128) * max(int(itemsize), 4)
    budget = max(vmem_budget - fixed, per_batch)

    divisors = [d for d in range(1, B + 1) if B % d == 0]
    ok = [d for d in divisors
          if d * per_batch <= budget and (d % sub_in == 0 or d == B)]
    if not ok:
        ok = [d for d in divisors if d * per_batch <= budget] or [1]
    if num_tc >= 2:
        multi = [d for d in ok if B // d >= num_tc]
        if multi:
            return max(multi)
    return max(ok)


def seq2space(x, Wa, ba, Wb, bb, Wo, bo, *, S, heads, tb=None):
    """x: [B, L, Cin]; weights in PyTorch layout ([out, in]). Returns [B, 1, Cout].

    Accepts f32 or bf16 x / weights; softmax and reductions run in f32 inside the
    kernel, only the MXU matmul operands stay in the storage dtype.
    """
    B, L, Cin = x.shape
    Cout = Wa.shape[0]
    assert L % S == 0 and Cout % heads == 0
    depth = Cout // heads
    Sp = L // S

    # glue: window + flatten so the kernel block is [TB, Sp, S*Cin] (lane-dense last dim).
    xw = x[:, :Sp * S, :].reshape(B, Sp, S * Cin)

    # glue: PyTorch Linear is y = x @ W.T + b -> pre-transpose; fuse wa||wb into one GEMM.
    WabT = jnp.concatenate([Wa.T, Wb.T], axis=1)                  # [Cin, 2*Cout]
    bab = jnp.concatenate([ba, bb]).reshape(1, 2 * Cout)
    # Fold the torch split/cat head-interleave (output channel c' = i*heads + h) into the
    # output projection: effective row c = h*depth + i takes row (c%depth)*heads + c//depth.
    perm = (jnp.arange(Cout) % depth) * heads + (jnp.arange(Cout) // depth)
    WoT_eff = Wo.T[perm, :]
    bo2 = bo.reshape(1, Cout)

    num_tc, vmem_limit = _tpu_gen_info()
    if tb is None:
        tb = _pick_batch_block(B, Sp, S * Cin, Cin, Cout, x.dtype.itemsize,
                               num_tc=num_tc, vmem_budget=int(vmem_limit * 0.75))
    assert B % tb == 0, (B, tb)

    kernel = functools.partial(_seq2space_kernel, cin=Cin, depth=depth)
    out = pl.pallas_call(
        kernel,
        # Output written directly in the storage dtype; wrapper only reshapes.
        out_shape=jax.ShapeDtypeStruct((B, Cout), x.dtype),
        grid_spec=pltpu.PrefetchScalarGridSpec(
            num_scalar_prefetch=0,
            grid=(B // tb,),
            # TODO(synk): for very large Sp*S*Cin add a second "arbitrary" grid axis over Sp
            # with an online-softmax accumulator instead of loading the whole window (v7x).
            in_specs=[
                pl.BlockSpec((tb, Sp, S * Cin), lambda b: (b, 0, 0)),
                # Grid-invariant weights/biases (constant index_map, re-fetch elided).
                # TODO(synk): pipeline_mode=pl.Buffered(1) would single-buffer these; left
                # at the default since the whole weight set is only a few (8,128) tiles.
                pl.BlockSpec((Cin, 2 * Cout), lambda b: (0, 0)),
                pl.BlockSpec((1, 2 * Cout), lambda b: (0, 0)),
                pl.BlockSpec((Cout, Cout), lambda b: (0, 0)),
                pl.BlockSpec((1, Cout), lambda b: (0, 0)),
            ],
            out_specs=pl.BlockSpec((tb, Cout), lambda b: (b, 0)),
        ),
        compiler_params=pltpu.CompilerParams(
            dimension_semantics=("parallel",),        # shards batch blocks across v7x's 2 TCs
            vmem_limit_bytes=vmem_limit,              # generation-aware (48 MiB v7x / 96 MiB else)
        ),
    )(xw, WabT, bab, WoT_eff, bo2)
    return out.reshape(B, 1, Cout)


def _ref_forward(x, Wa, ba, Wb, bb, Wo, bo, *, S, heads):
    """Pure-JAX faithful port of Seq2Space.forward (useConv=False, toSeq=False, Z=1)."""
    B, L, Cin = x.shape
    Cout = Wa.shape[0]
    D = Cout // heads
    Sp = L // S
    xt = jnp.swapaxes(x, -1, -2)                                       # [B, Cin, L]
    xp = jnp.max(xt[:, :, :Sp * S].reshape(B, Cin, Sp, S), axis=-1)    # MaxPool1d(S)
    xp = jnp.swapaxes(xp, -1, -2)                                      # [B, Sp, Cin]
    xa = xp @ Wa.T + ba
    xb = xp @ Wb.T + bb
    a = jnp.swapaxes(xa.reshape(B, Sp, heads, D), 1, 2)                # [B, H, Sp, D]
    b = jnp.swapaxes(xb.reshape(B, Sp, heads, D), 1, 2)                # [B, H, Sp, D]
    a = jnp.swapaxes(a, -1, -2)                                        # [B, H, D, Sp]
    a = jax.nn.softmax(a, axis=-1)
    outl = []
    for i in range(D):
        col = a[:, :, i, :]                                            # [B, H, Sp]
        entry = col - jnp.roll(col, i, axis=-1)
        outl.append(jnp.sum(entry * b[:, :, :, i], axis=-1))           # [B, H]
    xab = jnp.stack(outl, axis=-1)                                     # [B, H, D]
    d = jnp.transpose(xab, (0, 2, 1)).reshape(B, 1, heads * D)         # channel = i*H + h
    return d @ Wo.T + bo


if __name__ == "__main__":
    B, L, Cin, Cout, S, heads = 16, 16, 8, 32, 2, 4

    key = jax.random.PRNGKey(0)
    kx, k1, k2, k3, k4, k5, k6 = jax.random.split(key, 7)
    x = jax.random.normal(kx, (B, L, Cin), jnp.float32)
    Wa = jax.random.normal(k1, (Cout, Cin), jnp.float32) * 0.1
    ba = jax.random.normal(k2, (Cout,), jnp.float32) * 0.1
    Wb = jax.random.normal(k3, (Cout, Cin), jnp.float32) * 0.1
    bb = jax.random.normal(k4, (Cout,), jnp.float32) * 0.1
    Wo = jax.random.normal(k5, (Cout, Cout), jnp.float32) * 0.1
    bo = jax.random.normal(k6, (Cout,), jnp.float32) * 0.1

    # f32 path: check against the pure-JAX reference (approx reciprocal -> loose-ish tol).
    out = seq2space(x, Wa, ba, Wb, bb, Wo, bo, S=S, heads=heads)
    out = jax.block_until_ready(out)
    ref = _ref_forward(x, Wa, ba, Wb, bb, Wo, bo, S=S, heads=heads)
    assert out.shape == (B, 1, Cout), out.shape
    max_err = float(jnp.max(jnp.abs(out - ref)))
    assert max_err < 2e-3, f"max_err={max_err}"

    # bf16 storage path (HBM-bandwidth optimization for v6e/v7x); f32 in-kernel compute.
    bf = jnp.bfloat16
    out_bf16 = seq2space(x.astype(bf), Wa.astype(bf), ba.astype(bf), Wb.astype(bf),
                         bb.astype(bf), Wo.astype(bf), bo.astype(bf), S=S, heads=heads)
    out_bf16 = jax.block_until_ready(out_bf16)
    assert out_bf16.shape == (B, 1, Cout)
    out_bf16_f32 = out_bf16.astype(jnp.float32)
    assert bool(jnp.all(jnp.isfinite(out_bf16_f32)))
    assert jnp.allclose(out_bf16_f32, ref, atol=0.25), "bf16 path diverged"

    print("KERNEL_OK")
</pallas_src>

<mosaic_0001>
module attributes {stable_mosaic.version = 11 : i64} {
  func.func @_seq2space_kernel(%arg0: i32, %arg1: memref<16x8x16xf32, #tpu.memory_space<vmem>>, %arg2: memref<8x64xf32, #tpu.memory_space<vmem>>, %arg3: memref<1x64xf32, #tpu.memory_space<vmem>>, %arg4: memref<32x32xf32, #tpu.memory_space<vmem>>, %arg5: memref<1x32xf32, #tpu.memory_space<vmem>>, %arg6: memref<16x32xf32, #tpu.memory_space<vmem>>) attributes {dimension_semantics = [#tpu.dimension_semantics<parallel>], iteration_bounds = array<i64: 1>, scalar_prefetch = 0 : i64, scratch_operands = 0 : i64, tpu.core_type = #tpu.core_type<tc>, window_params = [{transform_indices = @transform_0, window_bounds = array<i64: 16, 8, 16>}, {pipeline_mode = #tpu.pipeline_mode<synchronous>, transform_indices = @transform_1, window_bounds = array<i64: 8, 64>}, {pipeline_mode = #tpu.pipeline_mode<synchronous>, transform_indices = @transform_2, window_bounds = array<i64: 1, 64>}, {pipeline_mode = #tpu.pipeline_mode<synchronous>, transform_indices = @transform_3, window_bounds = array<i64: 32, 32>}, {pipeline_mode = #tpu.pipeline_mode<synchronous>, transform_indices = @transform_4, window_bounds = array<i64: 1, 32>}, {transform_indices = @transform_5, window_bounds = array<i64: 16, 32>}]} {
    %c0 = arith.constant 0 : index
    %c0_0 = arith.constant 0 : index
    %c0_1 = arith.constant 0 : index
    %0 = vector.load %arg1[%c0, %c0_0, %c0_1] : memref<16x8x16xf32, #tpu.memory_space<vmem>>, vector<16x8x16xf32>
    %1 = vector.extract_strided_slice %0 {offsets = [0, 0, 0], sizes = [16, 8, 8], strides = [1, 1, 1]} : vector<16x8x16xf32> to vector<16x8x8xf32>
    %2 = vector.extract_strided_slice %0 {offsets = [0, 0, 8], sizes = [16, 8, 8], strides = [1, 1, 1]} : vector<16x8x16xf32> to vector<16x8x8xf32>
    %3 = arith.maximumf %1, %2 : vector<16x8x8xf32>
    %4 = vector.shape_cast %3 : vector<16x8x8xf32> to vector<128x8xf32>
    %c0_2 = arith.constant 0 : index
    %c0_3 = arith.constant 0 : index
    %5 = vector.load %arg2[%c0_2, %c0_3] : memref<8x64xf32, #tpu.memory_space<vmem>>, vector<8x64xf32>
    %cst = arith.constant dense<0.000000e+00> : vector<128x64xf32>
    %6 = tpu.matmul %4, %5, %cst {dimension_numbers = #tpu.dot_dimension_numbers<[1], [0], [0], [1], [0, 0, 1, 1], [], []>} : vector<128x8xf32>, vector<8x64xf32>, vector<128x64xf32> -> vector<128x64xf32>
    %c0_4 = arith.constant 0 : index
    %c0_5 = arith.constant 0 : index
    %7 = vector.load %arg3[%c0_4, %c0_5] : memref<1x64xf32, #tpu.memory_space<vmem>>, vector<1x64xf32>
    %8 = vector.broadcast %7 : vector<1x64xf32> to vector<128x64xf32>
    %9 = arith.addf %6, %8 : vector<128x64xf32>
    %10 = vector.extract_strided_slice %9 {offsets = [0, 0], sizes = [128, 32], strides = [1, 1]} : vector<128x64xf32> to vector<128x32xf32>
    %11 = vector.shape_cast %10 : vector<128x32xf32> to vector<16x8x32xf32>
    %12 = vector.extract_strided_slice %9 {offsets = [0, 32], sizes = [128, 32], strides = [1, 1]} : vector<128x64xf32> to vector<128x32xf32>
    %13 = vector.shape_cast %12 : vector<128x32xf32> to vector<16x8x32xf32>
    %cst_6 = arith.constant dense<0xFF800000> : vector<16x32xf32>
    %14 = vector.multi_reduction <maximumf>, %11, %cst_6 [1] : vector<16x8x32xf32> to vector<16x32xf32>
    %15 = vector.shape_cast %14 : vector<16x32xf32> to vector<16x1x32xf32>
    %16 = vector.broadcast %15 : vector<16x1x32xf32> to vector<16x8x32xf32>
    %17 = arith.subf %11, %16 : vector<16x8x32xf32>
    %18 = math.exp %17 : vector<16x8x32xf32>
    %cst_7 = arith.constant dense<0.000000e+00> : vector<16x32xf32>
    %19 = vector.multi_reduction <add>, %18, %cst_7 [1] : vector<16x8x32xf32> to vector<16x32xf32>
    %20 = vector.shape_cast %19 : vector<16x32xf32> to vector<16x1x32xf32>
    %21 = tpu.reciprocal %20 {approx = true} : vector<16x1x32xf32> -> vector<16x1x32xf32>
    %22 = vector.broadcast %21 : vector<16x1x32xf32> to vector<16x8x32xf32>
    %23 = arith.mulf %18, %22 : vector<16x8x32xf32>
    %24 = tpu.iota {dimensions = array<i32: 2>} : vector<1x1x32xi32>
    %c8_i32 = arith.constant 8 : i32
    %c0_i32 = arith.constant 0 : i32
    %25 = arith.cmpi eq, %c8_i32, %c0_i32 : i32
    %c1_i32 = arith.constant 1 : i32
    %26 = arith.select %25, %c1_i32, %c8_i32 : i32
    %27 = vector.broadcast %26 : i32 to vector<1x1x32xi32>
    %28 = arith.remsi %24, %27 : vector<1x1x32xi32>
    %c0_i32_8 = arith.constant 0 : i32
    %29 = vector.broadcast %c0_i32_8 : i32 to vector<1x1x32xi32>
    %30 = arith.cmpi ne, %28, %29 : vector<1x1x32xi32>
    %c0_i32_9 = arith.constant 0 : i32
    %31 = vector.broadcast %c0_i32_9 : i32 to vector<1x1x32xi32>
    %32 = arith.cmpi slt, %28, %31 : vector<1x1x32xi32>
    %c0_i32_10 = arith.constant 0 : i32
    %33 = arith.cmpi slt, %26, %c0_i32_10 : i32
    %34 = vector.broadcast %33 : i1 to vector<1x1x32xi1>
    %35 = vector.broadcast %34 : vector<1x1x32xi1> to vector<1x1x32xi1>
    %36 = arith.xori %32, %35 : vector<1x1x32xi1>
    %37 = arith.andi %36, %30 : vector<1x1x32xi1>
    %38 = vector.broadcast %26 : i32 to vector<1x1x32xi32>
    %39 = arith.addi %28, %38 : vector<1x1x32xi32>
    %40 = arith.select %37, %39, %28 : vector<1x1x32xi1>, vector<1x1x32xi32>
    %c1_i32_11 = arith.constant 1 : i32
    %41 = vector.broadcast %c1_i32_11 : i32 to vector<1x1x32xi32>
    %42 = arith.cmpi eq, %40, %41 : vector<1x1x32xi32>
    %43 = vector.extract_strided_slice %23 {offsets = [0, 7, 0], sizes = [16, 1, 32], strides = [1, 1, 1]} : vector<16x8x32xf32> to vector<16x1x32xf32>
    %44 = vector.extract_strided_slice %23 {offsets = [0, 0, 0], sizes = [16, 7, 32], strides = [1, 1, 1]} : vector<16x8x32xf32> to vector<16x7x32xf32>
    %45 = tpu.concatenate %43, %44 in 1 : vector<16x1x32xf32>, vector<16x7x32xf32> -> vector<16x8x32xf32>
    %46 = vector.shape_cast %42 : vector<1x1x32xi1> to vector<1x1x32xi1>
    %47 = vector.broadcast %46 : vector<1x1x32xi1> to vector<16x8x32xi1>
    %48 = arith.select %47, %45, %23 : vector<16x8x32xi1>, vector<16x8x32xf32>
    %c2_i32 = arith.constant 2 : i32
    %49 = vector.broadcast %c2_i32 : i32 to vector<1x1x32xi32>
    %50 = arith.cmpi eq, %40, %49 : vector<1x1x32xi32>
    %51 = vector.extract_strided_slice %23 {offsets = [0, 6, 0], sizes = [16, 2, 32], strides = [1, 1, 1]} : vector<16x8x32xf32> to vector<16x2x32xf32>
    %52 = vector.extract_strided_slice %23 {offsets = [0, 0, 0], sizes = [16, 6, 32], strides = [1, 1, 1]} : vector<16x8x32xf32> to vector<16x6x32xf32>
    %53 = tpu.concatenate %51, %52 in 1 : vector<16x2x32xf32>, vector<16x6x32xf32> -> vector<16x8x32xf32>
    %54 = vector.shape_cast %50 : vector<1x1x32xi1> to vector<1x1x32xi1>
    %55 = vector.broadcast %54 : vector<1x1x32xi1> to vector<16x8x32xi1>
    %56 = arith.select %55, %53, %48 : vector<16x8x32xi1>, vector<16x8x32xf32>
    %c3_i32 = arith.constant 3 : i32
    %57 = vector.broadcast %c3_i32 : i32 to vector<1x1x32xi32>
    %58 = arith.cmpi eq, %40, %57 : vector<1x1x32xi32>
    %59 = vector.extract_strided_slice %23 {offsets = [0, 5, 0], sizes = [16, 3, 32], strides = [1, 1, 1]} : vector<16x8x32xf32> to vector<16x3x32xf32>
    %60 = vector.extract_strided_slice %23 {offsets = [0, 0, 0], sizes = [16, 5, 32], strides = [1, 1, 1]} : vector<16x8x32xf32> to vector<16x5x32xf32>
    %61 = tpu.concatenate %59, %60 in 1 : vector<16x3x32xf32>, vector<16x5x32xf32> -> vector<16x8x32xf32>
    %62 = vector.shape_cast %58 : vector<1x1x32xi1> to vector<1x1x32xi1>
    %63 = vector.broadcast %62 : vector<1x1x32xi1> to vector<16x8x32xi1>
    %64 = arith.select %63, %61, %56 : vector<16x8x32xi1>, vector<16x8x32xf32>
    %c4_i32 = arith.constant 4 : i32
    %65 = vector.broadcast %c4_i32 : i32 to vector<1x1x32xi32>
    %66 = arith.cmpi eq, %40, %65 : vector<1x1x32xi32>
    %67 = vector.extract_strided_slice %23 {offsets = [0, 4, 0], sizes = [16, 4, 32], strides = [1, 1, 1]} : vector<16x8x32xf32> to vector<16x4x32xf32>
    %68 = vector.extract_strided_slice %23 {offsets = [0, 0, 0], sizes = [16, 4, 32], strides = [1, 1, 1]} : vector<16x8x32xf32> to vector<16x4x32xf32>
    %69 = tpu.concatenate %67, %68 in 1 : vector<16x4x32xf32>, vector<16x4x32xf32> -> vector<16x8x32xf32>
    %70 = vector.shape_cast %66 : vector<1x1x32xi1> to vector<1x1x32xi1>
    %71 = vector.broadcast %70 : vector<1x1x32xi1> to vector<16x8x32xi1>
    %72 = arith.select %71, %69, %64 : vector<16x8x32xi1>, vector<16x8x32xf32>
    %c5_i32 = arith.constant 5 : i32
    %73 = vector.broadcast %c5_i32 : i32 to vector<1x1x32xi32>
    %74 = arith.cmpi eq, %40, %73 : vector<1x1x32xi32>
    %75 = vector.extract_strided_slice %23 {offsets = [0, 3, 0], sizes = [16, 5, 32], strides = [1, 1, 1]} : vector<16x8x32xf32> to vector<16x5x32xf32>
    %76 = vector.extract_strided_slice %23 {offsets = [0, 0, 0], sizes = [16, 3, 32], strides = [1, 1, 1]} : vector<16x8x32xf32> to vector<16x3x32xf32>
    %77 = tpu.concatenate %75, %76 in 1 : vector<16x5x32xf32>, vector<16x3x32xf32> -> vector<16x8x32xf32>
    %78 = vector.shape_cast %74 : vector<1x1x32xi1> to vector<1x1x32xi1>
    %79 = vector.broadcast %78 : vector<1x1x32xi1> to vector<16x8x32xi1>
    %80 = arith.select %79, %77, %72 : vector<16x8x32xi1>, vector<16x8x32xf32>
    %c6_i32 = arith.constant 6 : i32
    %81 = vector.broadcast %c6_i32 : i32 to vector<1x1x32xi32>
    %82 = arith.cmpi eq, %40, %81 : vector<1x1x32xi32>
    %83 = vector.extract_strided_slice %23 {offsets = [0, 2, 0], sizes = [16, 6, 32], strides = [1, 1, 1]} : vector<16x8x32xf32> to vector<16x6x32xf32>
    %84 = vector.extract_strided_slice %23 {offsets = [0, 0, 0], sizes = [16, 2, 32], strides = [1, 1, 1]} : vector<16x8x32xf32> to vector<16x2x32xf32>
    %85 = tpu.concatenate %83, %84 in 1 : vector<16x6x32xf32>, vector<16x2x32xf32> -> vector<16x8x32xf32>
    %86 = vector.shape_cast %82 : vector<1x1x32xi1> to vector<1x1x32xi1>
    %87 = vector.broadcast %86 : vector<1x1x32xi1> to vector<16x8x32xi1>
    %88 = arith.select %87, %85, %80 : vector<16x8x32xi1>, vector<16x8x32xf32>
    %c7_i32 = arith.constant 7 : i32
    %89 = vector.broadcast %c7_i32 : i32 to vector<1x1x32xi32>
    %90 = arith.cmpi eq, %40, %89 : vector<1x1x32xi32>
    %91 = vector.extract_strided_slice %23 {offsets = [0, 1, 0], sizes = [16, 7, 32], strides = [1, 1, 1]} : vector<16x8x32xf32> to vector<16x7x32xf32>
    %92 = vector.extract_strided_slice %23 {offsets = [0, 0, 0], sizes = [16, 1, 32], strides = [1, 1, 1]} : vector<16x8x32xf32> to vector<16x1x32xf32>
    %93 = tpu.concatenate %91, %92 in 1 : vector<16x7x32xf32>, vector<16x1x32xf32> -> vector<16x8x32xf32>
    %94 = vector.shape_cast %90 : vector<1x1x32xi1> to vector<1x1x32xi1>
    %95 = vector.broadcast %94 : vector<1x1x32xi1> to vector<16x8x32xi1>
    %96 = arith.select %95, %93, %88 : vector<16x8x32xi1>, vector<16x8x32xf32>
    %97 = arith.subf %23, %96 : vector<16x8x32xf32>
    %98 = arith.mulf %97, %13 : vector<16x8x32xf32>
    %cst_12 = arith.constant dense<0.000000e+00> : vector<16x32xf32>
    %99 = vector.multi_reduction <add>, %98, %cst_12 [1] : vector<16x8x32xf32> to vector<16x32xf32>
    %c0_13 = arith.constant 0 : index
    %c0_14 = arith.constant 0 : index
    %100 = vector.load %arg4[%c0_13, %c0_14] : memref<32x32xf32, #tpu.memory_space<vmem>>, vector<32x32xf32>
    %cst_15 = arith.constant dense<0.000000e+00> : vector<16x32xf32>
    %101 = tpu.matmul %99, %100, %cst_15 {dimension_numbers = #tpu.dot_dimension_numbers<[1], [0], [0], [1], [0, 0, 1, 1], [], []>} : vector<16x32xf32>, vector<32x32xf32>, vector<16x32xf32> -> vector<16x32xf32>
    %c0_16 = arith.constant 0 : index
    %c0_17 = arith.constant 0 : index
    %102 = vector.load %arg5[%c0_16, %c0_17] : memref<1x32xf32, #tpu.memory_space<vmem>>, vector<1x32xf32>
    %103 = vector.broadcast %102 : vector<1x32xf32> to vector<16x32xf32>
    %104 = arith.addf %101, %103 : vector<16x32xf32>
    %c0_18 = arith.constant 0 : index
    %c0_19 = arith.constant 0 : index
    %105 = vector.load %arg6[%c0_18, %c0_19] : memref<16x32xf32, #tpu.memory_space<vmem>>, vector<16x32xf32>
    tpu.vector_store %arg6[%c0_18, %c0_19], %104 {strides = array<i32>} : memref<16x32xf32, #tpu.memory_space<vmem>>, vector<16x32xf32>,
    return
  }
  func.func @transform_0(%arg0: i32) -> (i32, i32, i32) {
    %c0_i32 = arith.constant 0 : i32
    %c0_i32_0 = arith.constant 0 : i32
    %c0_i32_1 = arith.constant 0 : i32
    return %arg0, %c0_i32, %c0_i32_0 : i32, i32, i32
  }
  func.func @transform_1(%arg0: i32) -> (i32, i32) {
    %c0_i32 = arith.constant 0 : i32
    %c0_i32_0 = arith.constant 0 : i32
    %c0_i32_1 = arith.constant 0 : i32
    return %c0_i32, %c0_i32_0 : i32, i32
  }
  func.func @transform_2(%arg0: i32) -> (i32, i32) {
    %c0_i32 = arith.constant 0 : i32
    %c0_i32_0 = arith.constant 0 : i32
    %c0_i32_1 = arith.constant 0 : i32
    return %c0_i32, %c0_i32_0 : i32, i32
  }
  func.func @transform_3(%arg0: i32) -> (i32, i32) {
    %c0_i32 = arith.constant 0 : i32
    %c0_i32_0 = arith.constant 0 : i32
    %c0_i32_1 = arith.constant 0 : i32
    return %c0_i32, %c0_i32_0 : i32, i32
  }
  func.func @transform_4(%arg0: i32) -> (i32, i32) {
    %c0_i32 = arith.constant 0 : i32
    %c0_i32_0 = arith.constant 0 : i32
    %c0_i32_1 = arith.constant 0 : i32
    return %c0_i32, %c0_i32_0 : i32, i32
  }
  func.func @transform_5(%arg0: i32) -> (i32, i32) {
    %c0_i32 = arith.constant 0 : i32
    %c0_i32_0 = arith.constant 0 : i32
    return %arg0, %c0_i32 : i32, i32
  }
}

</mosaic_0001>

<llo_original>
// kernel: tpu_custom_call.1
$region0: #{tpu_custom_call.1}
  #allocation0 [shape = 'u32[]', space=smem, size = 0x4, offset = 0x4, fixed_abs, tag = 'smem constant byte address 0x4 - core index']
  #allocation1 [shape = 'u32[144,128]{1,0:T(1,128)}', space=vmem, size = 0x12000, scoped, tag = 'internal scratch']
  %s0 = inlined_call_operand.hbm [shape: f32[16,8,16], index: 0, kind: input, shape index: {}]
  %s1 = inlined_call_operand.hbm [shape: f32[8,64], index: 1, kind: input, shape index: {}]
  %s2 = inlined_call_operand.vmem [shape: f32[1,64], index: 2, kind: input, shape index: {}]
  %s3 = inlined_call_operand.hbm [shape: f32[32,32], index: 3, kind: input, shape index: {}]
  %s4 = inlined_call_operand.vmem [shape: f32[1,32], index: 4, kind: input, shape index: {}]
  %s5 = inlined_call_operand.hbm [shape: f32[16,32], index: 5, kind: output, shape index: {}]
  %s6 = sld [smem:[#allocation0]]
  $region42: #{tpu_custom_call.1} parent=0
    _
  %s8 = ssub.s32 1, %s6
  %s9 = scalar_select 0, %s8, %s6
  $region1: #{tpu_custom_call.1} parent=0
    #allocation2 [shape = 'u8[65536]{0}', space=vmem, size = 0x10000, scoped, tag = 'input window, operand 0, single buffered']
    #allocation3 [shape = 's32[1]{0}', space=sflag, size = 0x4, scoped, tag = 'scoped memory for tpu_custom_call.1']
    #allocation4 [shape = 's32[1]{0}', space=sflag, size = 0x4, scoped, tag = 'scoped memory for tpu_custom_call.1']
    #allocation5 [shape = 'u8[4096]{0}', space=vmem, size = 0x1000, scoped, tag = 'input window, operand 1, single buffered']
    #allocation6 [shape = 's32[1]{0}', space=sflag, size = 0x4, scoped, tag = 'scoped memory for tpu_custom_call.1']
    #allocation7 [shape = 'u8[16384]{0}', space=vmem, size = 0x4000, scoped, tag = 'input window, operand 3, single buffered']
    #allocation8 [shape = 'u8[8192]{0}', space=vmem, size = 0x2000, scoped, tag = 'output window, operand 0, single buffered']
    %10 = vsyncpa [#allocation3], 0
    %11 = vsyncpa [#allocation6], 0
    %12 = vsyncpa [#allocation4], 0
    // Predicated region
    $region2: #{tpu_custom_call.1} parent=1 // pred_check
      _
    $region3: #{tpu_custom_call.1} parent=1 // pred_check_branch
      %14 = sbr.rel (0) target = $region5
    $region4: #{tpu_custom_call.1} parent=1 // pred_region
      %s16 = ssub.s32 2048, 2048
      %17 = vsyncadd [#allocation3], %s16
      %s18 = sshll.u32 [#allocation2], 4
      %s19 = int_to_ptr.vmem [resolvable:$true] %s18
      %24 = dma.hbm_to_vmem [thread:$0]  %s0, 2048, %s19, [#allocation3], 128, 128, 8
    $region5: #{tpu_custom_call.1} parent=1 // pred_fallthru
      _
    // Predicated region
    $region6: #{tpu_custom_call.1} parent=1 // pred_check
      _
    $region7: #{tpu_custom_call.1} parent=1 // pred_check_branch
      %26 = sbr.rel (0) target = $region9
    $region8: #{tpu_custom_call.1} parent=1 // pred_region
      %s28 = ssub.s32 128, 128
      %29 = vsyncadd [#allocation6], %s28
      %s31 = sshll.u32 [#allocation5], 4
      %s32 = int_to_ptr.vmem [resolvable:$true] %s31
      %34 = dma.hbm_to_vmem [thread:$0]  %s1, 128, %s32, [#allocation6]
    $region9: #{tpu_custom_call.1} parent=1 // pred_fallthru
      _
    // Predicated region
    $region10: #{tpu_custom_call.1} parent=1 // pred_check
      _
    $region11: #{tpu_custom_call.1} parent=1 // pred_check_branch
      %36 = sbr.rel (0) target = $region13
    $region12: #{tpu_custom_call.1} parent=1 // pred_region
      _
    $region13: #{tpu_custom_call.1} parent=1 // pred_fallthru
      _
    // Predicated region
    $region14: #{tpu_custom_call.1} parent=1 // pred_check
      _
    $region15: #{tpu_custom_call.1} parent=1 // pred_check_branch
      %38 = sbr.rel (0) target = $region17
    $region16: #{tpu_custom_call.1} parent=1 // pred_region
      %s40 = ssub.s32 512, 512
      %41 = vsyncadd [#allocation6], %s40
      %s42 = sshll.u32 [#allocation7], 4
      %s43 = int_to_ptr.vmem [resolvable:$true] %s42
      %48 = dma.hbm_to_vmem [thread:$0]  %s3, 512, %s43, [#allocation6], 128, 128, 8
    $region17: #{tpu_custom_call.1} parent=1 // pred_fallthru
      _
    // Predicated region
    $region18: #{tpu_custom_call.1} parent=1 // pred_check
      _
    $region19: #{tpu_custom_call.1} parent=1 // pred_check_branch
      %50 = sbr.rel (0) target = $region21
    $region20: #{tpu_custom_call.1} parent=1 // pred_region
      _
    $region21: #{tpu_custom_call.1} parent=1 // pred_fallthru
      _
    // Predicated region
    $region22: #{tpu_custom_call.1} parent=1 // pred_check
      _
    $region23: #{tpu_custom_call.1} parent=1 // pred_check_branch
      %52 = sbr.rel (0) target = $region25
    $region24: #{tpu_custom_call.1} parent=1 // pred_region
      %53 = dma.done [#allocation3], 2048
    $region25: #{tpu_custom_call.1} parent=1 // pred_fallthru
      _
    // Predicated region
    $region26: #{tpu_custom_call.1} parent=1 // pred_check
      _
    $region27: #{tpu_custom_call.1} parent=1 // pred_check_branch
      %55 = sbr.rel (0) target = $region29
    $region28: #{tpu_custom_call.1} parent=1 // pred_region
      %56 = dma.done [#allocation6], 128
    $region29: #{tpu_custom_call.1} parent=1 // pred_fallthru
      _
    // Predicated region
    $region30: #{tpu_custom_call.1} parent=1 // pred_check
      _
    $region31: #{tpu_custom_call.1} parent=1 // pred_check_branch
      %58 = sbr.rel (0) target = $region33
    $region32: #{tpu_custom_call.1} parent=1 // pred_region
      %59 = dma.done [#allocation6], 512
    $region33: #{tpu_custom_call.1} parent=1 // pred_fallthru
      _
    %v60 = vld [vmem:[#allocation2] sm:$0xff]
    %v61 = vld [vmem:[#allocation2 + $0x8] sm:$0xff]
    %v62 = vld [vmem:[#allocation2 + $0x10] sm:$0xff]
    %v63 = vld [vmem:[#allocation2 + $0x18] sm:$0xff]
    %v64 = vld [vmem:[#allocation2 + $0x20] sm:$0xff]
    %v65 = vld [vmem:[#allocation2 + $0x28] sm:$0xff]
    %v66 = vld [vmem:[#allocation2 + $0x30] sm:$0xff]
    %v67 = vld [vmem:[#allocation2 + $0x38] sm:$0xff]
    %v68 = vld [vmem:[#allocation2 + $0x40] sm:$0xff]
    %v69 = vld [vmem:[#allocation2 + $0x48] sm:$0xff]
    %v70 = vld [vmem:[#allocation2 + $0x50] sm:$0xff]
    %v71 = vld [vmem:[#allocation2 + $0x58] sm:$0xff]
    %v72 = vld [vmem:[#allocation2 + $0x60] sm:$0xff]
    %v73 = vld [vmem:[#allocation2 + $0x68] sm:$0xff]
    %v74 = vld [vmem:[#allocation2 + $0x70] sm:$0xff]
    %v75 = vld [vmem:[#allocation2 + $0x78] sm:$0xff]
    %92 = vrot.lane.b32.xlu0 %v60, 120
    %v93 = vpop.permute.xlu0 %92
    %94 = vrot.lane.b32.xlu0 %v61, 120
    %v95 = vpop.permute.xlu0 %94
    %96 = vrot.lane.b32.xlu0 %v62, 120
    %v97 = vpop.permute.xlu0 %96
    %98 = vrot.lane.b32.xlu0 %v63, 120
    %v99 = vpop.permute.xlu0 %98
    %100 = vrot.lane.b32.xlu0 %v64, 120
    %v101 = vpop.permute.xlu0 %100
    %102 = vrot.lane.b32.xlu0 %v65, 120
    %v103 = vpop.permute.xlu0 %102
    %104 = vrot.lane.b32.xlu0 %v66, 120
    %v105 = vpop.permute.xlu0 %104
    %106 = vrot.lane.b32.xlu0 %v67, 120
    %v107 = vpop.permute.xlu0 %106
    %108 = vrot.lane.b32.xlu0 %v68, 120
    %v109 = vpop.permute.xlu0 %108
    %110 = vrot.lane.b32.xlu0 %v69, 120
    %v111 = vpop.permute.xlu0 %110
    %112 = vrot.lane.b32.xlu0 %v70, 120
    %v113 = vpop.permute.xlu0 %112
    %114 = vrot.lane.b32.xlu0 %v71, 120
    %v115 = vpop.permute.xlu0 %114
    %116 = vrot.lane.b32.xlu0 %v72, 120
    %v117 = vpop.permute.xlu0 %116
    %118 = vrot.lane.b32.xlu0 %v73, 120
    %v119 = vpop.permute.xlu0 %118
    %120 = vrot.lane.b32.xlu0 %v74, 120
    %v121 = vpop.permute.xlu0 %120
    %122 = vrot.lane.b32.xlu0 %v75, 120
    %v123 = vpop.permute.xlu0 %122
    %v140 = vmax.f32 %v60, %v93
    %v141 = vmax.f32 %v61, %v95
    %v142 = vmax.f32 %v62, %v97
    %v143 = vmax.f32 %v63, %v99
    %v144 = vmax.f32 %v64, %v101
    %v145 = vmax.f32 %v65, %v103
    %v146 = vmax.f32 %v66, %v105
    %v147 = vmax.f32 %v67, %v107
    %v148 = vmax.f32 %v68, %v109
    %v149 = vmax.f32 %v69, %v111
    %v150 = vmax.f32 %v70, %v113
    %v151 = vmax.f32 %v71, %v115
    %v152 = vmax.f32 %v72, %v117
    %v153 = vmax.f32 %v73, %v119
    %v154 = vmax.f32 %v74, %v121
    %v155 = vmax.f32 %v75, %v123
    %v156 = vld [vmem:[#allocation5] sm:$0xff]
    %v157 = vld [vmem:[%s2] sm:$0x1]
    %v159 = vlaneseq
    %v160 = vshrl.u32 %v159, 7
    %v161 = vsub.s32 0, %v160
    %v162 = vrot.slane %v157, %v161
    %vm164 = vcmask 64512
    %v166 = vsel %vm164, %v140, 0
    %v169 = vsel %vm164, %v141, 0
    %v172 = vsel %vm164, %v142, 0
    %v175 = vsel %vm164, %v143, 0
    %v178 = vsel %vm164, %v144, 0
    %v181 = vsel %vm164, %v145, 0
    %v184 = vsel %vm164, %v146, 0
    %v187 = vsel %vm164, %v147, 0
    %v190 = vsel %vm164, %v148, 0
    %v193 = vsel %vm164, %v149, 0
    %v196 = vsel %vm164, %v150, 0
    %v199 = vsel %vm164, %v151, 0
    %v202 = vsel %vm164, %v152, 0
    %v205 = vsel %vm164, %v153, 0
    %v208 = vsel %vm164, %v154, 0
    %v211 = vsel %vm164, %v155, 0
    %213 = vmatprep.subr.mxu0 0.0
    %214 = vmatpush1.msra.mxu0 0.0
    %215 = vmatprep.subr.mxu0 0.0
    %216 = vmatpush1.msra.mxu0 0.0
    %217 = vmatprep.subr.mxu0 0.0
    %218 = vmatpush1.msra.mxu0 0.0
    %219 = vmatprep.subr.mxu0 0.0
    %220 = vmatpush1.msra.mxu0 0.0
    %221 = vmatprep.subr.mxu0 0.0
    %222 = vmatpush1.msra.mxu0 0.0
    %223 = vmatprep.subr.mxu0 0.0
    %224 = vmatpush1.msra.mxu0 0.0
    %225 = vmatprep.subr.mxu0 0.0
    %226 = vmatpush1.msra.mxu0 0.0
    %227 = vmatprep.subr.mxu0 0.0
    %228 = vmatpush1.msra.mxu0 0.0
    %229 = vmatprep.subr.mxu0 0.0
    %230 = vmatpush1.msra.mxu0 0.0
    %231 = vmatprep.subr.mxu0 0.0
    %232 = vmatpush1.msra.mxu0 0.0
    %233 = vmatprep.subr.mxu0 0.0
    %234 = vmatpush1.msra.mxu0 0.0
    %235 = vmatprep.subr.mxu0 0.0
    %236 = vmatpush1.msra.mxu0 0.0
    %237 = vmatprep.subr.mxu0 0.0
    %238 = vmatpush1.msra.mxu0 0.0
    %239 = vmatprep.subr.mxu0 0.0
    %240 = vmatpush1.msra.mxu0 0.0
    %241 = vmatprep.subr.mxu0 0.0
    %242 = vmatpush1.msra.mxu0 0.0
    %243 = vmatprep.subr.mxu0 0.0
    %244 = vmatpush1.msra.mxu0 %v156
    %245 = vmatprep.subr.mxu0 0.0
    %246 = vmatpush2.msra.mxu0 0.0
    %247 = vmatprep.subr.mxu0 0.0
    %248 = vmatpush2.msra.mxu0 0.0
    %249 = vmatprep.subr.mxu0 0.0
    %250 = vmatpush2.msra.mxu0 0.0
    %251 = vmatprep.subr.mxu0 0.0
    %252 = vmatpush2.msra.mxu0 0.0
    %253 = vmatprep.subr.mxu0 0.0
    %254 = vmatpush2.msra.mxu0 0.0
    %255 = vmatprep.subr.mxu0 0.0
    %256 = vmatpush2.msra.mxu0 0.0
    %257 = vmatprep.subr.mxu0 0.0
    %258 = vmatpush2.msra.mxu0 0.0
    %259 = vmatprep.subr.mxu0 0.0
    %260 = vmatpush2.msra.mxu0 0.0
    %261 = vmatprep.subr.mxu0 0.0
    %262 = vmatpush2.msra.mxu0 0.0
    %263 = vmatprep.subr.mxu0 0.0
    %264 = vmatpush2.msra.mxu0 0.0
    %265 = vmatprep.subr.mxu0 0.0
    %266 = vmatpush2.msra.mxu0 0.0
    %267 = vmatprep.subr.mxu0 0.0
    %268 = vmatpush2.msra.mxu0 0.0
    %269 = vmatprep.subr.mxu0 0.0
    %270 = vmatpush2.msra.mxu0 0.0
    %271 = vmatprep.subr.mxu0 0.0
    %272 = vmatpush2.msra.mxu0 0.0
    %273 = vmatprep.subr.mxu0 0.0
    %274 = vmatpush2.msra.mxu0 0.0
    %275 = vmatprep.subr.mxu0 0.0
    %276 = vmatpush2.msra.mxu0 0.0
    %277 = vmatprep.mubr.f32.mxu0 0.0
    %278 = vmatmul.mubr.f32.gmra.mxu0 %v166
    %v279 = vpop.f32.mrf.mxu0
    %v280 = vadd.f32 %v162, %v279
    %v281 = vpop.f32.mrf.mxu0
    %282 = vmatprep.mubr.f32.mxu0 0.0
    %283 = vmatmul.mubr.f32.gmra.mxu0 %v169
    %v284 = vpop.f32.mrf.mxu0
    %v285 = vadd.f32 %v162, %v284
    %v286 = vpop.f32.mrf.mxu0
    %287 = vmatprep.mubr.f32.mxu0 0.0
    %288 = vmatmul.mubr.f32.gmra.mxu0 %v172
    %v289 = vpop.f32.mrf.mxu0
    %v290 = vadd.f32 %v162, %v289
    %v291 = vpop.f32.mrf.mxu0
    %292 = vmatprep.mubr.f32.mxu0 0.0
    %293 = vmatmul.mubr.f32.gmra.mxu0 %v175
    %v294 = vpop.f32.mrf.mxu0
    %v295 = vadd.f32 %v162, %v294
    %v296 = vpop.f32.mrf.mxu0
    %297 = vmatprep.mubr.f32.mxu0 0.0
    %298 = vmatmul.mubr.f32.gmra.mxu0 %v178
    %v299 = vpop.f32.mrf.mxu0
    %v300 = vadd.f32 %v162, %v299
    %v301 = vpop.f32.mrf.mxu0
    %302 = vmatprep.mubr.f32.mxu0 0.0
    %303 = vmatmul.mubr.f32.gmra.mxu0 %v181
    %v304 = vpop.f32.mrf.mxu0
    %v305 = vadd.f32 %v162, %v304
    %v306 = vpop.f32.mrf.mxu0
    %307 = vmatprep.mubr.f32.mxu0 0.0
    %308 = vmatmul.mubr.f32.gmra.mxu0 %v184
    %v309 = vpop.f32.mrf.mxu0
    %v310 = vadd.f32 %v162, %v309
    %v311 = vpop.f32.mrf.mxu0
    %312 = vmatprep.mubr.f32.mxu0 0.0
    %313 = vmatmul.mubr.f32.gmra.mxu0 %v187
    %v314 = vpop.f32.mrf.mxu0
    %v315 = vadd.f32 %v162, %v314
    %v316 = vpop.f32.mrf.mxu0
    %317 = vmatprep.mubr.f32.mxu0 0.0
    %318 = vmatmul.mubr.f32.gmra.mxu0 %v190
    %v319 = vpop.f32.mrf.mxu0
    %v320 = vadd.f32 %v162, %v319
    %v321 = vpop.f32.mrf.mxu0
    %322 = vmatprep.mubr.f32.mxu0 0.0
    %323 = vmatmul.mubr.f32.gmra.mxu0 %v193
    %v324 = vpop.f32.mrf.mxu0
    %v325 = vadd.f32 %v162, %v324
    %v326 = vpop.f32.mrf.mxu0
    %327 = vmatprep.mubr.f32.mxu0 0.0
    %328 = vmatmul.mubr.f32.gmra.mxu0 %v196
    %v329 = vpop.f32.mrf.mxu0
    %v330 = vadd.f32 %v162, %v329
    %v331 = vpop.f32.mrf.mxu0
    %332 = vmatprep.mubr.f32.mxu0 0.0
    %333 = vmatmul.mubr.f32.gmra.mxu0 %v199
    %v334 = vpop.f32.mrf.mxu0
    %v335 = vadd.f32 %v162, %v334
    %v336 = vpop.f32.mrf.mxu0
    %337 = vmatprep.mubr.f32.mxu0 0.0
    %338 = vmatmul.mubr.f32.gmra.mxu0 %v202
    %v339 = vpop.f32.mrf.mxu0
    %v340 = vadd.f32 %v162, %v339
    %v341 = vpop.f32.mrf.mxu0
    %342 = vmatprep.mubr.f32.mxu0 0.0
    %343 = vmatmul.mubr.f32.gmra.mxu0 %v205
    %v344 = vpop.f32.mrf.mxu0
    %v345 = vadd.f32 %v162, %v344
    %v346 = vpop.f32.mrf.mxu0
    %347 = vmatprep.mubr.f32.mxu0 0.0
    %348 = vmatmul.mubr.f32.gmra.mxu0 %v208
    %v349 = vpop.f32.mrf.mxu0
    %v350 = vadd.f32 %v162, %v349
    %v351 = vpop.f32.mrf.mxu0
    %352 = vmatprep.mubr.f32.mxu0 0.0
    %353 = vmatmul.mubr.f32.gmra.mxu0 %v211
    %v354 = vpop.f32.mrf.mxu0
    %v355 = vadd.f32 %v162, %v354
    %v356 = vpop.f32.mrf.mxu0
    %357 = vdwg.mxu0
    %vm358 = vcmask 261120
    %v359 = vsel %vm358, %v280, -inf
    %v360 = vrot.slane %v359, 4
    %v361 = vmax.f32 %v359, %v360
    %v362 = vrot.slane %v361, 2
    %v363 = vmax.f32 %v361, %v362
    %v364 = vrot.slane %v363, 1
    %v365 = vmax.f32 %v363, %v364
    %v366 = vsel %vm358, %v285, -inf
    %v367 = vrot.slane %v366, 4
    %v368 = vmax.f32 %v366, %v367
    %v369 = vrot.slane %v368, 2
    %v370 = vmax.f32 %v368, %v369
    %v371 = vrot.slane %v370, 1
    %v372 = vmax.f32 %v370, %v371
    %v373 = vsel %vm358, %v290, -inf
    %v374 = vrot.slane %v373, 4
    %v375 = vmax.f32 %v373, %v374
    %v376 = vrot.slane %v375, 2
    %v377 = vmax.f32 %v375, %v376
    %v378 = vrot.slane %v377, 1
    %v379 = vmax.f32 %v377, %v378
    %v380 = vsel %vm358, %v295, -inf
    %v381 = vrot.slane %v380, 4
    %v382 = vmax.f32 %v380, %v381
    %v383 = vrot.slane %v382, 2
    %v384 = vmax.f32 %v382, %v383
    %v385 = vrot.slane %v384, 1
    %v386 = vmax.f32 %v384, %v385
    %v387 = vsel %vm358, %v300, -inf
    %v388 = vrot.slane %v387, 4
    %v389 = vmax.f32 %v387, %v388
    %v390 = vrot.slane %v389, 2
    %v391 = vmax.f32 %v389, %v390
    %v392 = vrot.slane %v391, 1
    %v393 = vmax.f32 %v391, %v392
    %v394 = vsel %vm358, %v305, -inf
    %v395 = vrot.slane %v394, 4
    %v396 = vmax.f32 %v394, %v395
    %v397 = vrot.slane %v396, 2
    %v398 = vmax.f32 %v396, %v397
    %v399 = vrot.slane %v398, 1
    %v400 = vmax.f32 %v398, %v399
    %v401 = vsel %vm358, %v310, -inf
    %v402 = vrot.slane %v401, 4
    %v403 = vmax.f32 %v401, %v402
    %v404 = vrot.slane %v403, 2
    %v405 = vmax.f32 %v403, %v404
    %v406 = vrot.slane %v405, 1
    %v407 = vmax.f32 %v405, %v406
    %v408 = vsel %vm358, %v315, -inf
    %v409 = vrot.slane %v408, 4
    %v410 = vmax.f32 %v408, %v409
    %v411 = vrot.slane %v410, 2
    %v412 = vmax.f32 %v410, %v411
    %v413 = vrot.slane %v412, 1
    %v414 = vmax.f32 %v412, %v413
    %v415 = vsel %vm358, %v320, -inf
    %v416 = vrot.slane %v415, 4
    %v417 = vmax.f32 %v415, %v416
    %v418 = vrot.slane %v417, 2
    %v419 = vmax.f32 %v417, %v418
    %v420 = vrot.slane %v419, 1
    %v421 = vmax.f32 %v419, %v420
    %v422 = vsel %vm358, %v325, -inf
    %v423 = vrot.slane %v422, 4
    %v424 = vmax.f32 %v422, %v423
    %v425 = vrot.slane %v424, 2
    %v426 = vmax.f32 %v424, %v425
    %v427 = vrot.slane %v426, 1
    %v428 = vmax.f32 %v426, %v427
    %v429 = vsel %vm358, %v330, -inf
    %v430 = vrot.slane %v429, 4
    %v431 = vmax.f32 %v429, %v430
    %v432 = vrot.slane %v431, 2
    %v433 = vmax.f32 %v431, %v432
    %v434 = vrot.slane %v433, 1
    %v435 = vmax.f32 %v433, %v434
    %v436 = vsel %vm358, %v335, -inf
    %v437 = vrot.slane %v436, 4
    %v438 = vmax.f32 %v436, %v437
    %v439 = vrot.slane %v438, 2
    %v440 = vmax.f32 %v438, %v439
    %v441 = vrot.slane %v440, 1
    %v442 = vmax.f32 %v440, %v441
    %v443 = vsel %vm358, %v340, -inf
    %v444 = vrot.slane %v443, 4
    %v445 = vmax.f32 %v443, %v444
    %v446 = vrot.slane %v445, 2
    %v447 = vmax.f32 %v445, %v446
    %v448 = vrot.slane %v447, 1
    %v449 = vmax.f32 %v447, %v448
    %v450 = vsel %vm358, %v345, -inf
    %v451 = vrot.slane %v450, 4
    %v452 = vmax.f32 %v450, %v451
    %v453 = vrot.slane %v452, 2
    %v454 = vmax.f32 %v452, %v453
    %v455 = vrot.slane %v454, 1
    %v456 = vmax.f32 %v454, %v455
    %v457 = vsel %vm358, %v350, -inf
    %v458 = vrot.slane %v457, 4
    %v459 = vmax.f32 %v457, %v458
    %v460 = vrot.slane %v459, 2
    %v461 = vmax.f32 %v459, %v460
    %v462 = vrot.slane %v461, 1
    %v463 = vmax.f32 %v461, %v462
    %v464 = vsel %vm358, %v355, -inf
    %v465 = vrot.slane %v464, 4
    %v466 = vmax.f32 %v464, %v465
    %v467 = vrot.slane %v466, 2
    %v468 = vmax.f32 %v466, %v467
    %v469 = vrot.slane %v468, 1
    %v470 = vmax.f32 %v468, %v469
    %v471 = vsub.f32 %v280, %v365
    %v472 = vsub.f32 %v285, %v372
    %v473 = vsub.f32 %v290, %v379
    %v474 = vsub.f32 %v295, %v386
    %v475 = vsub.f32 %v300, %v393
    %v476 = vsub.f32 %v305, %v400
    %v477 = vsub.f32 %v310, %v407
    %v478 = vsub.f32 %v315, %v414
    %v479 = vsub.f32 %v320, %v421
    %v480 = vsub.f32 %v325, %v428
    %v481 = vsub.f32 %v330, %v435
    %v482 = vsub.f32 %v335, %v442
    %v483 = vsub.f32 %v340, %v449
    %v484 = vsub.f32 %v345, %v456
    %v485 = vsub.f32 %v350, %v463
    %v486 = vsub.f32 %v355, %v470
    %v487 = vmul.f32 %v471, 1.442695
    %v488 = vpow.pop %v487
    %v489 = vmul.f32 %v472, 1.442695
    %v490 = vpow.pop %v489
    %v491 = vmul.f32 %v473, 1.442695
    %v492 = vpow.pop %v491
    %v493 = vmul.f32 %v474, 1.442695
    %v494 = vpow.pop %v493
    %v495 = vmul.f32 %v475, 1.442695
    %v496 = vpow.pop %v495
    %v497 = vmul.f32 %v476, 1.442695
    %v498 = vpow.pop %v497
    %v499 = vmul.f32 %v477, 1.442695
    %v500 = vpow.pop %v499
    %v501 = vmul.f32 %v478, 1.442695
    %v502 = vpow.pop %v501
    %v503 = vmul.f32 %v479, 1.442695
    %v504 = vpow.pop %v503
    %v505 = vmul.f32 %v480, 1.442695
    %v506 = vpow.pop %v505
    %v507 = vmul.f32 %v481, 1.442695
    %v508 = vpow.pop %v507
    %v509 = vmul.f32 %v482, 1.442695
    %v510 = vpow.pop %v509
    %v511 = vmul.f32 %v483, 1.442695
    %v512 = vpow.pop %v511
    %v513 = vmul.f32 %v484, 1.442695
    %v514 = vpow.pop %v513
    %v515 = vmul.f32 %v485, 1.442695
    %v516 = vpow.pop %v515
    %v517 = vmul.f32 %v486, 1.442695
    %v518 = vpow.pop %v517
    %v519 = vsel %vm358, %v488, 0.0
    %v520 = vrot.slane %v519, 4
    %v521 = vadd.f32 %v519, %v520
    %v522 = vrot.slane %v521, 2
    %v523 = vadd.f32 %v521, %v522
    %v524 = vrot.slane %v523, 1
    %v525 = vadd.f32 %v523, %v524
    %v526 = vsel %vm358, %v490, 0.0
    %v527 = vrot.slane %v526, 4
    %v528 = vadd.f32 %v526, %v527
    %v529 = vrot.slane %v528, 2
    %v530 = vadd.f32 %v528, %v529
    %v531 = vrot.slane %v530, 1
    %v532 = vadd.f32 %v530, %v531
    %v533 = vsel %vm358, %v492, 0.0
    %v534 = vrot.slane %v533, 4
    %v535 = vadd.f32 %v533, %v534
    %v536 = vrot.slane %v535, 2
    %v537 = vadd.f32 %v535, %v536
    %v538 = vrot.slane %v537, 1
    %v539 = vadd.f32 %v537, %v538
    %v540 = vsel %vm358, %v494, 0.0
    %v541 = vrot.slane %v540, 4
    %v542 = vadd.f32 %v540, %v541
    %v543 = vrot.slane %v542, 2
    %v544 = vadd.f32 %v542, %v543
    %v545 = vrot.slane %v544, 1
    %v546 = vadd.f32 %v544, %v545
    %v547 = vsel %vm358, %v496, 0.0
    %v548 = vrot.slane %v547, 4
    %v549 = vadd.f32 %v547, %v548
    %v550 = vrot.slane %v549, 2
    %v551 = vadd.f32 %v549, %v550
    %v552 = vrot.slane %v551, 1
    %v553 = vadd.f32 %v551, %v552
    %v554 = vsel %vm358, %v498, 0.0
    %v555 = vrot.slane %v554, 4
    %v556 = vadd.f32 %v554, %v555
    %v557 = vrot.slane %v556, 2
    %v558 = vadd.f32 %v556, %v557
    %v559 = vrot.slane %v558, 1
    %v560 = vadd.f32 %v558, %v559
    %v561 = vsel %vm358, %v500, 0.0
    %v562 = vrot.slane %v561, 4
    %v563 = vadd.f32 %v561, %v562
    %v564 = vrot.slane %v563, 2
    %v565 = vadd.f32 %v563, %v564
    %v566 = vrot.slane %v565, 1
    %v567 = vadd.f32 %v565, %v566
    %v568 = vsel %vm358, %v502, 0.0
    %v569 = vrot.slane %v568, 4
    %v570 = vadd.f32 %v568, %v569
    %v571 = vrot.slane %v570, 2
    %v572 = vadd.f32 %v570, %v571
    %v573 = vrot.slane %v572, 1
    %v574 = vadd.f32 %v572, %v573
    %v575 = vsel %vm358, %v504, 0.0
    %v576 = vrot.slane %v575, 4
    %v577 = vadd.f32 %v575, %v576
    %v578 = vrot.slane %v577, 2
    %v579 = vadd.f32 %v577, %v578
    %v580 = vrot.slane %v579, 1
    %v581 = vadd.f32 %v579, %v580
    %v582 = vsel %vm358, %v506, 0.0
    %v583 = vrot.slane %v582, 4
    %v584 = vadd.f32 %v582, %v583
    %v585 = vrot.slane %v584, 2
    %v586 = vadd.f32 %v584, %v585
    %v587 = vrot.slane %v586, 1
    %v588 = vadd.f32 %v586, %v587
    %v589 = vsel %vm358, %v508, 0.0
    %v590 = vrot.slane %v589, 4
    %v591 = vadd.f32 %v589, %v590
    %v592 = vrot.slane %v591, 2
    %v593 = vadd.f32 %v591, %v592
    %v594 = vrot.slane %v593, 1
    %v595 = vadd.f32 %v593, %v594
    %v596 = vsel %vm358, %v510, 0.0
    %v597 = vrot.slane %v596, 4
    %v598 = vadd.f32 %v596, %v597
    %v599 = vrot.slane %v598, 2
    %v600 = vadd.f32 %v598, %v599
    %v601 = vrot.slane %v600, 1
    %v602 = vadd.f32 %v600, %v601
    %v603 = vsel %vm358, %v512, 0.0
    %v604 = vrot.slane %v603, 4
    %v605 = vadd.f32 %v603, %v604
    %v606 = vrot.slane %v605, 2
    %v607 = vadd.f32 %v605, %v606
    %v608 = vrot.slane %v607, 1
    %v609 = vadd.f32 %v607, %v608
    %v610 = vsel %vm358, %v514, 0.0
    %v611 = vrot.slane %v610, 4
    %v612 = vadd.f32 %v610, %v611
    %v613 = vrot.slane %v612, 2
    %v614 = vadd.f32 %v612, %v613
    %v615 = vrot.slane %v614, 1
    %v616 = vadd.f32 %v614, %v615
    %v617 = vsel %vm358, %v516, 0.0
    %v618 = vrot.slane %v617, 4
    %v619 = vadd.f32 %v617, %v618
    %v620 = vrot.slane %v619, 2
    %v621 = vadd.f32 %v619, %v620
    %v622 = vrot.slane %v621, 1
    %v623 = vadd.f32 %v621, %v622
    %v624 = vsel %vm358, %v518, 0.0
    %v625 = vrot.slane %v624, 4
    %v626 = vadd.f32 %v624, %v625
    %v627 = vrot.slane %v626, 2
    %v628 = vadd.f32 %v626, %v627
    %v629 = vrot.slane %v628, 1
    %v630 = vadd.f32 %v628, %v629
    %v631 = vrcp.pop %v525
    %v632 = vrcp.pop %v532
    %v633 = vrcp.pop %v539
    %v634 = vrcp.pop %v546
    %v635 = vrcp.pop %v553
    %v636 = vrcp.pop %v560
    %v637 = vrcp.pop %v567
    %v638 = vrcp.pop %v574
    %v639 = vrcp.pop %v581
    %v640 = vrcp.pop %v588
    %v641 = vrcp.pop %v595
    %v642 = vrcp.pop %v602
    %v643 = vrcp.pop %v609
    %v644 = vrcp.pop %v616
    %v645 = vrcp.pop %v623
    %v646 = vrcp.pop %v630
    %v647 = vmul.f32 %v488, %v631
    %v648 = vmul.f32 %v490, %v632
    %v649 = vmul.f32 %v492, %v633
    %v650 = vmul.f32 %v494, %v634
    %v651 = vmul.f32 %v496, %v635
    %v652 = vmul.f32 %v498, %v636
    %v653 = vmul.f32 %v500, %v637
    %v654 = vmul.f32 %v502, %v638
    %v655 = vmul.f32 %v504, %v639
    %v656 = vmul.f32 %v506, %v640
    %v657 = vmul.f32 %v508, %v641
    %v658 = vmul.f32 %v510, %v642
    %v659 = vmul.f32 %v512, %v643
    %v660 = vmul.f32 %v514, %v644
    %v661 = vmul.f32 %v516, %v645
    %v662 = vmul.f32 %v518, %v646
    %v663 = vlaneseq
    %v664 = vand.u32 %v663, 127
    %vm665 = vcmp.lt.s32.totalorder %v664, 0
    %v666 = vsub.s32 0, %v664
    %v667 = vsel %vm665, %v666, %v664
    %v668 = vshrl.u32 %v667, 3
    %v669 = vand.u32 %v667, 7
    %v670 = vsub.s32 0, %v669
    %v671 = vsel %vm665, %v670, %v669
    %vm672 = vcmp.ne.s32.totalorder %v671, 0
    %vm673 = vcmp.lt.s32.totalorder %v671, 0
    %vm674 = vmand %vm673, %vm672
    %v675 = vadd.s32 %v671, 8
    %v676 = vsel %vm674, %v675, %v671
    %vm677 = vcmp.eq.s32.totalorder %v676, 1
    %v694 = vrot.slane %v647, 7
    %v695 = vrot.slane %v648, 7
    %v696 = vrot.slane %v649, 7
    %v697 = vrot.slane %v650, 7
    %v698 = vrot.slane %v651, 7
    %v699 = vrot.slane %v652, 7
    %v700 = vrot.slane %v653, 7
    %v701 = vrot.slane %v654, 7
    %v702 = vrot.slane %v655, 7
    %v703 = vrot.slane %v656, 7
    %v704 = vrot.slane %v657, 7
    %v705 = vrot.slane %v658, 7
    %v706 = vrot.slane %v659, 7
    %v707 = vrot.slane %v660, 7
    %v708 = vrot.slane %v661, 7
    %v709 = vrot.slane %v662, 7
    %vm726 = vcmask 1040384
    %v727 = vsel %vm726, %v694, %v694
    %v728 = vsel %vm726, %v695, %v695
    %v729 = vsel %vm726, %v696, %v696
    %v730 = vsel %vm726, %v697, %v697
    %v731 = vsel %vm726, %v698, %v698
    %v732 = vsel %vm726, %v699, %v699
    %v733 = vsel %vm726, %v700, %v700
    %v734 = vsel %vm726, %v701, %v701
    %v735 = vsel %vm726, %v702, %v702
    %v736 = vsel %vm726, %v703, %v703
    %v737 = vsel %vm726, %v704, %v704
    %v738 = vsel %vm726, %v705, %v705
    %v739 = vsel %vm726, %v706, %v706
    %v740 = vsel %vm726, %v707, %v707
    %v741 = vsel %vm726, %v708, %v708
    %v742 = vsel %vm726, %v709, %v709
    %v743 = vsel %vm677, 1, 0
    %vm744 = vcmp.eq.s32.totalorder %v743, 1
    %v745 = vsel %vm744, %v727, %v647
    %v746 = vsel %vm744, %v728, %v648
    %v747 = vsel %vm744, %v729, %v649
    %v748 = vsel %vm744, %v730, %v650
    %v749 = vsel %vm744, %v731, %v651
    %v750 = vsel %vm744, %v732, %v652
    %v751 = vsel %vm744, %v733, %v653
    %v752 = vsel %vm744, %v734, %v654
    %v753 = vsel %vm744, %v735, %v655
    %v754 = vsel %vm744, %v736, %v656
    %v755 = vsel %vm744, %v737, %v657
    %v756 = vsel %vm744, %v738, %v658
    %v757 = vsel %vm744, %v739, %v659
    %v758 = vsel %vm744, %v740, %v660
    %v759 = vsel %vm744, %v741, %v661
    %v760 = vsel %vm744, %v742, %v662
    %vm761 = vcmp.eq.s32.totalorder %v676, 2
    %v762 = vrot.slane %v647, 6
    %v763 = vrot.slane %v648, 6
    %v764 = vrot.slane %v649, 6
    %v765 = vrot.slane %v650, 6
    %v766 = vrot.slane %v651, 6
    %v767 = vrot.slane %v652, 6
    %v768 = vrot.slane %v653, 6
    %v769 = vrot.slane %v654, 6
    %v770 = vrot.slane %v655, 6
    %v771 = vrot.slane %v656, 6
    %v772 = vrot.slane %v657, 6
    %v773 = vrot.slane %v658, 6
    %v774 = vrot.slane %v659, 6
    %v775 = vrot.slane %v660, 6
    %v776 = vrot.slane %v661, 6
    %v777 = vrot.slane %v662, 6
    %vm794 = vcmask 1041408
    %v795 = vsel %vm794, %v762, %v762
    %v796 = vsel %vm794, %v763, %v763
    %v797 = vsel %vm794, %v764, %v764
    %v798 = vsel %vm794, %v765, %v765
    %v799 = vsel %vm794, %v766, %v766
    %v800 = vsel %vm794, %v767, %v767
    %v801 = vsel %vm794, %v768, %v768
    %v802 = vsel %vm794, %v769, %v769
    %v803 = vsel %vm794, %v770, %v770
    %v804 = vsel %vm794, %v771, %v771
    %v805 = vsel %vm794, %v772, %v772
    %v806 = vsel %vm794, %v773, %v773
    %v807 = vsel %vm794, %v774, %v774
    %v808 = vsel %vm794, %v775, %v775
    %v809 = vsel %vm794, %v776, %v776
    %v810 = vsel %vm794, %v777, %v777
    %v811 = vsel %vm761, 1, 0
    %vm812 = vcmp.eq.s32.totalorder %v811, 1
    %v813 = vsel %vm812, %v795, %v745
    %v814 = vsel %vm812, %v796, %v746
    %v815 = vsel %vm812, %v797, %v747
    %v816 = vsel %vm812, %v798, %v748
    %v817 = vsel %vm812, %v799, %v749
    %v818 = vsel %vm812, %v800, %v750
    %v819 = vsel %vm812, %v801, %v751
    %v820 = vsel %vm812, %v802, %v752
    %v821 = vsel %vm812, %v803, %v753
    %v822 = vsel %vm812, %v804, %v754
    %v823 = vsel %vm812, %v805, %v755
    %v824 = vsel %vm812, %v806, %v756
    %v825 = vsel %vm812, %v807, %v757
    %v826 = vsel %vm812, %v808, %v758
    %v827 = vsel %vm812, %v809, %v759
    %v828 = vsel %vm812, %v810, %v760
    %vm829 = vcmp.eq.s32.totalorder %v676, 3
    %v830 = vrot.slane %v647, 5
    %v831 = vrot.slane %v648, 5
    %v832 = vrot.slane %v649, 5
    %v833 = vrot.slane %v650, 5
    %v834 = vrot.slane %v651, 5
    %v835 = vrot.slane %v652, 5
    %v836 = vrot.slane %v653, 5
    %v837 = vrot.slane %v654, 5
    %v838 = vrot.slane %v655, 5
    %v839 = vrot.slane %v656, 5
    %v840 = vrot.slane %v657, 5
    %v841 = vrot.slane %v658, 5
    %v842 = vrot.slane %v659, 5
    %v843 = vrot.slane %v660, 5
    %v844 = vrot.slane %v661, 5
    %v845 = vrot.slane %v662, 5
    %vm862 = vcmask 1042432
    %v863 = vsel %vm862, %v830, %v830
    %v864 = vsel %vm862, %v831, %v831
    %v865 = vsel %vm862, %v832, %v832
    %v866 = vsel %vm862, %v833, %v833
    %v867 = vsel %vm862, %v834, %v834
    %v868 = vsel %vm862, %v835, %v835
    %v869 = vsel %vm862, %v836, %v836
    %v870 = vsel %vm862, %v837, %v837
    %v871 = vsel %vm862, %v838, %v838
    %v872 = vsel %vm862, %v839, %v839
    %v873 = vsel %vm862, %v840, %v840
    %v874 = vsel %vm862, %v841, %v841
    %v875 = vsel %vm862, %v842, %v842
    %v876 = vsel %vm862, %v843, %v843
    %v877 = vsel %vm862, %v844, %v844
    %v878 = vsel %vm862, %v845, %v845
    %v879 = vsel %vm829, 1, 0
    %vm880 = vcmp.eq.s32.totalorder %v879, 1
    %v881 = vsel %vm880, %v863, %v813
    %v882 = vsel %vm880, %v864, %v814
    %v883 = vsel %vm880, %v865, %v815
    %v884 = vsel %vm880, %v866, %v816
    %v885 = vsel %vm880, %v867, %v817
    %v886 = vsel %vm880, %v868, %v818
    %v887 = vsel %vm880, %v869, %v819
    %v888 = vsel %vm880, %v870, %v820
    %v889 = vsel %vm880, %v871, %v821
    %v890 = vsel %vm880, %v872, %v822
    %v891 = vsel %vm880, %v873, %v823
    %v892 = vsel %vm880, %v874, %v824
    %v893 = vsel %vm880, %v875, %v825
    %v894 = vsel %vm880, %v876, %v826
    %v895 = vsel %vm880, %v877, %v827
    %v896 = vsel %vm880, %v878, %v828
    %vm897 = vcmp.eq.s32.totalorder %v676, 4
    %v898 = vrot.slane %v647, 4
    %v899 = vrot.slane %v648, 4
    %v900 = vrot.slane %v649, 4
    %v901 = vrot.slane %v650, 4
    %v902 = vrot.slane %v651, 4
    %v903 = vrot.slane %v652, 4
    %v904 = vrot.slane %v653, 4
    %v905 = vrot.slane %v654, 4
    %v906 = vrot.slane %v655, 4
    %v907 = vrot.slane %v656, 4
    %v908 = vrot.slane %v657, 4
    %v909 = vrot.slane %v658, 4
    %v910 = vrot.slane %v659, 4
    %v911 = vrot.slane %v660, 4
    %v912 = vrot.slane %v661, 4
    %v913 = vrot.slane %v662, 4
    %vm930 = vcmask 1043456
    %v931 = vsel %vm930, %v898, %v898
    %v932 = vsel %vm930, %v899, %v899
    %v933 = vsel %vm930, %v900, %v900
    %v934 = vsel %vm930, %v901, %v901
    %v935 = vsel %vm930, %v902, %v902
    %v936 = vsel %vm930, %v903, %v903
    %v937 = vsel %vm930, %v904, %v904
    %v938 = vsel %vm930, %v905, %v905
    %v939 = vsel %vm930, %v906, %v906
    %v940 = vsel %vm930, %v907, %v907
    %v941 = vsel %vm930, %v908, %v908
    %v942 = vsel %vm930, %v909, %v909
    %v943 = vsel %vm930, %v910, %v910
    %v944 = vsel %vm930, %v911, %v911
    %v945 = vsel %vm930, %v912, %v912
    %v946 = vsel %vm930, %v913, %v913
    %v947 = vsel %vm897, 1, 0
    %vm948 = vcmp.eq.s32.totalorder %v947, 1
    %v949 = vsel %vm948, %v931, %v881
    %v950 = vsel %vm948, %v932, %v882
    %v951 = vsel %vm948, %v933, %v883
    %v952 = vsel %vm948, %v934, %v884
    %v953 = vsel %vm948, %v935, %v885
    %v954 = vsel %vm948, %v936, %v886
    %v955 = vsel %vm948, %v937, %v887
    %v956 = vsel %vm948, %v938, %v888
    %v957 = vsel %vm948, %v939, %v889
    %v958 = vsel %vm948, %v940, %v890
    %v959 = vsel %vm948, %v941, %v891
    %v960 = vsel %vm948, %v942, %v892
    %v961 = vsel %vm948, %v943, %v893
    %v962 = vsel %vm948, %v944, %v894
    %v963 = vsel %vm948, %v945, %v895
    %v964 = vsel %vm948, %v946, %v896
    %vm965 = vcmp.eq.s32.totalorder %v676, 5
    %v966 = vrot.slane %v647, 3
    %v967 = vrot.slane %v648, 3
    %v968 = vrot.slane %v649, 3
    %v969 = vrot.slane %v650, 3
    %v970 = vrot.slane %v651, 3
    %v971 = vrot.slane %v652, 3
    %v972 = vrot.slane %v653, 3
    %v973 = vrot.slane %v654, 3
    %v974 = vrot.slane %v655, 3
    %v975 = vrot.slane %v656, 3
    %v976 = vrot.slane %v657, 3
    %v977 = vrot.slane %v658, 3
    %v978 = vrot.slane %v659, 3
    %v979 = vrot.slane %v660, 3
    %v980 = vrot.slane %v661, 3
    %v981 = vrot.slane %v662, 3
    %vm998 = vcmask 1044480
    %v999 = vsel %vm998, %v966, %v966
    %v1000 = vsel %vm998, %v967, %v967
    %v1001 = vsel %vm998, %v968, %v968
    %v1002 = vsel %vm998, %v969, %v969
    %v1003 = vsel %vm998, %v970, %v970
    %v1004 = vsel %vm998, %v971, %v971
    %v1005 = vsel %vm998, %v972, %v972
    %v1006 = vsel %vm998, %v973, %v973
    %v1007 = vsel %vm998, %v974, %v974
    %v1008 = vsel %vm998, %v975, %v975
    %v1009 = vsel %vm998, %v976, %v976
    %v1010 = vsel %vm998, %v977, %v977
    %v1011 = vsel %vm998, %v978, %v978
    %v1012 = vsel %vm998, %v979, %v979
    %v1013 = vsel %vm998, %v980, %v980
    %v1014 = vsel %vm998, %v981, %v981
    %v1015 = vsel %vm965, 1, 0
    %vm1016 = vcmp.eq.s32.totalorder %v1015, 1
    %v1017 = vsel %vm1016, %v999, %v949
    %v1018 = vsel %vm1016, %v1000, %v950
    %v1019 = vsel %vm1016, %v1001, %v951
    %v1020 = vsel %vm1016, %v1002, %v952
    %v1021 = vsel %vm1016, %v1003, %v953
    %v1022 = vsel %vm1016, %v1004, %v954
    %v1023 = vsel %vm1016, %v1005, %v955
    %v1024 = vsel %vm1016, %v1006, %v956
    %v1025 = vsel %vm1016, %v1007, %v957
    %v1026 = vsel %vm1016, %v1008, %v958
    %v1027 = vsel %vm1016, %v1009, %v959
    %v1028 = vsel %vm1016, %v1010, %v960
    %v1029 = vsel %vm1016, %v1011, %v961
    %v1030 = vsel %vm1016, %v1012, %v962
    %v1031 = vsel %vm1016, %v1013, %v963
    %v1032 = vsel %vm1016, %v1014, %v964
    %vm1033 = vcmp.eq.s32.totalorder %v676, 6
    %v1034 = vrot.slane %v647, 2
    %v1035 = vrot.slane %v648, 2
    %v1036 = vrot.slane %v649, 2
    %v1037 = vrot.slane %v650, 2
    %v1038 = vrot.slane %v651, 2
    %v1039 = vrot.slane %v652, 2
    %v1040 = vrot.slane %v653, 2
    %v1041 = vrot.slane %v654, 2
    %v1042 = vrot.slane %v655, 2
    %v1043 = vrot.slane %v656, 2
    %v1044 = vrot.slane %v657, 2
    %v1045 = vrot.slane %v658, 2
    %v1046 = vrot.slane %v659, 2
    %v1047 = vrot.slane %v660, 2
    %v1048 = vrot.slane %v661, 2
    %v1049 = vrot.slane %v662, 2
    %vm1066 = vcmask 1045504
    %v1067 = vsel %vm1066, %v1034, %v1034
    %v1068 = vsel %vm1066, %v1035, %v1035
    %v1069 = vsel %vm1066, %v1036, %v1036
    %v1070 = vsel %vm1066, %v1037, %v1037
    %v1071 = vsel %vm1066, %v1038, %v1038
    %v1072 = vsel %vm1066, %v1039, %v1039
    %v1073 = vsel %vm1066, %v1040, %v1040
    %v1074 = vsel %vm1066, %v1041, %v1041
    %v1075 = vsel %vm1066, %v1042, %v1042
    %v1076 = vsel %vm1066, %v1043, %v1043
    %v1077 = vsel %vm1066, %v1044, %v1044
    %v1078 = vsel %vm1066, %v1045, %v1045
    %v1079 = vsel %vm1066, %v1046, %v1046
    %v1080 = vsel %vm1066, %v1047, %v1047
    %v1081 = vsel %vm1066, %v1048, %v1048
    %v1082 = vsel %vm1066, %v1049, %v1049
    %v1083 = vsel %vm1033, 1, 0
    %vm1084 = vcmp.eq.s32.totalorder %v1083, 1
    %v1085 = vsel %vm1084, %v1067, %v1017
    %v1086 = vsel %vm1084, %v1068, %v1018
    %v1087 = vsel %vm1084, %v1069, %v1019
    %v1088 = vsel %vm1084, %v1070, %v1020
    %v1089 = vsel %vm1084, %v1071, %v1021
    %v1090 = vsel %vm1084, %v1072, %v1022
    %v1091 = vsel %vm1084, %v1073, %v1023
    %v1092 = vsel %vm1084, %v1074, %v1024
    %v1093 = vsel %vm1084, %v1075, %v1025
    %v1094 = vsel %vm1084, %v1076, %v1026
    %v1095 = vsel %vm1084, %v1077, %v1027
    %v1096 = vsel %vm1084, %v1078, %v1028
    %v1097 = vsel %vm1084, %v1079, %v1029
    %v1098 = vsel %vm1084, %v1080, %v1030
    %v1099 = vsel %vm1084, %v1081, %v1031
    %v1100 = vsel %vm1084, %v1082, %v1032
    %vm1101 = vcmp.eq.s32.totalorder %v676, 7
    %v1102 = vrot.slane %v647, 1
    %v1103 = vrot.slane %v648, 1
    %v1104 = vrot.slane %v649, 1
    %v1105 = vrot.slane %v650, 1
    %v1106 = vrot.slane %v651, 1
    %v1107 = vrot.slane %v652, 1
    %v1108 = vrot.slane %v653, 1
    %v1109 = vrot.slane %v654, 1
    %v1110 = vrot.slane %v655, 1
    %v1111 = vrot.slane %v656, 1
    %v1112 = vrot.slane %v657, 1
    %v1113 = vrot.slane %v658, 1
    %v1114 = vrot.slane %v659, 1
    %v1115 = vrot.slane %v660, 1
    %v1116 = vrot.slane %v661, 1
    %v1117 = vrot.slane %v662, 1
    %vm1134 = vcmask 1046528
    %v1135 = vsel %vm1134, %v1102, %v1102
    %v1136 = vsel %vm1134, %v1103, %v1103
    %v1137 = vsel %vm1134, %v1104, %v1104
    %v1138 = vsel %vm1134, %v1105, %v1105
    %v1139 = vsel %vm1134, %v1106, %v1106
    %v1140 = vsel %vm1134, %v1107, %v1107
    %v1141 = vsel %vm1134, %v1108, %v1108
    %v1142 = vsel %vm1134, %v1109, %v1109
    %v1143 = vsel %vm1134, %v1110, %v1110
    %v1144 = vsel %vm1134, %v1111, %v1111
    %v1145 = vsel %vm1134, %v1112, %v1112
    %v1146 = vsel %vm1134, %v1113, %v1113
    %v1147 = vsel %vm1134, %v1114, %v1114
    %v1148 = vsel %vm1134, %v1115, %v1115
    %v1149 = vsel %vm1134, %v1116, %v1116
    %v1150 = vsel %vm1134, %v1117, %v1117
    %v1151 = vsel %vm1101, 1, 0
    %vm1152 = vcmp.eq.s32.totalorder %v1151, 1
    %v1153 = vsel %vm1152, %v1135, %v1085
    %v1154 = vsel %vm1152, %v1136, %v1086
    %v1155 = vsel %vm1152, %v1137, %v1087
    %v1156 = vsel %vm1152, %v1138, %v1088
    %v1157 = vsel %vm1152, %v1139, %v1089
    %v1158 = vsel %vm1152, %v1140, %v1090
    %v1159 = vsel %vm1152, %v1141, %v1091
    %v1160 = vsel %vm1152, %v1142, %v1092
    %v1161 = vsel %vm1152, %v1143, %v1093
    %v1162 = vsel %vm1152, %v1144, %v1094
    %v1163 = vsel %vm1152, %v1145, %v1095
    %v1164 = vsel %vm1152, %v1146, %v1096
    %v1165 = vsel %vm1152, %v1147, %v1097
    %v1166 = vsel %vm1152, %v1148, %v1098
    %v1167 = vsel %vm1152, %v1149, %v1099
    %v1168 = vsel %vm1152, %v1150, %v1100
    %v1169 = vsub.f32 %v647, %v1153
    %v1170 = vsub.f32 %v648, %v1154
    %v1171 = vsub.f32 %v649, %v1155
    %v1172 = vsub.f32 %v650, %v1156
    %v1173 = vsub.f32 %v651, %v1157
    %v1174 = vsub.f32 %v652, %v1158
    %v1175 = vsub.f32 %v653, %v1159
    %v1176 = vsub.f32 %v654, %v1160
    %v1177 = vsub.f32 %v655, %v1161
    %v1178 = vsub.f32 %v656, %v1162
    %v1179 = vsub.f32 %v657, %v1163
    %v1180 = vsub.f32 %v658, %v1164
    %v1181 = vsub.f32 %v659, %v1165
    %v1182 = vsub.f32 %v660, %v1166
    %v1183 = vsub.f32 %v661, %v1167
    %v1184 = vsub.f32 %v662, %v1168
    %1201 = vrot.lane.b32.xlu0 %v280, 96
    %v1202 = vpop.permute.xlu0 %1201
    %1203 = vrot.lane.b32.xlu0 %v285, 96
    %v1204 = vpop.permute.xlu0 %1203
    %1205 = vrot.lane.b32.xlu0 %v290, 96
    %v1206 = vpop.permute.xlu0 %1205
    %1207 = vrot.lane.b32.xlu0 %v295, 96
    %v1208 = vpop.permute.xlu0 %1207
    %1209 = vrot.lane.b32.xlu0 %v300, 96
    %v1210 = vpop.permute.xlu0 %1209
    %1211 = vrot.lane.b32.xlu0 %v305, 96
    %v1212 = vpop.permute.xlu0 %1211
    %1213 = vrot.lane.b32.xlu0 %v310, 96
    %v1214 = vpop.permute.xlu0 %1213
    %1215 = vrot.lane.b32.xlu0 %v315, 96
    %v1216 = vpop.permute.xlu0 %1215
    %1217 = vrot.lane.b32.xlu0 %v320, 96
    %v1218 = vpop.permute.xlu0 %1217
    %1219 = vrot.lane.b32.xlu0 %v325, 96
    %v1220 = vpop.permute.xlu0 %1219
    %1221 = vrot.lane.b32.xlu0 %v330, 96
    %v1222 = vpop.permute.xlu0 %1221
    %1223 = vrot.lane.b32.xlu0 %v335, 96
    %v1224 = vpop.permute.xlu0 %1223
    %1225 = vrot.lane.b32.xlu0 %v340, 96
    %v1226 = vpop.permute.xlu0 %1225
    %1227 = vrot.lane.b32.xlu0 %v345, 96
    %v1228 = vpop.permute.xlu0 %1227
    %1229 = vrot.lane.b32.xlu0 %v350, 96
    %v1230 = vpop.permute.xlu0 %1229
    %1231 = vrot.lane.b32.xlu0 %v355, 96
    %v1232 = vpop.permute.xlu0 %1231
    %v1249 = vmul.f32 %v1169, %v1202
    %v1250 = vmul.f32 %v1170, %v1204
    %v1251 = vmul.f32 %v1171, %v1206
    %v1252 = vmul.f32 %v1172, %v1208
    %v1253 = vmul.f32 %v1173, %v1210
    %v1254 = vmul.f32 %v1174, %v1212
    %v1255 = vmul.f32 %v1175, %v1214
    %v1256 = vmul.f32 %v1176, %v1216
    %v1257 = vmul.f32 %v1177, %v1218
    %v1258 = vmul.f32 %v1178, %v1220
    %v1259 = vmul.f32 %v1179, %v1222
    %v1260 = vmul.f32 %v1180, %v1224
    %v1261 = vmul.f32 %v1181, %v1226
    %v1262 = vmul.f32 %v1182, %v1228
    %v1263 = vmul.f32 %v1183, %v1230
    %v1264 = vmul.f32 %v1184, %v1232
    %v1265 = vsel %vm358, %v1249, 0.0
    %v1266 = vrot.slane %v1265, 4
    %v1267 = vadd.f32 %v1265, %v1266
    %v1268 = vrot.slane %v1267, 2
    %v1269 = vadd.f32 %v1267, %v1268
    %v1270 = vrot.slane %v1269, 1
    %v1271 = vadd.f32 %v1269, %v1270
    %v1272 = vsel %vm358, %v1250, 0.0
    %v1273 = vrot.slane %v1272, 4
    %v1274 = vadd.f32 %v1272, %v1273
    %v1275 = vrot.slane %v1274, 2
    %v1276 = vadd.f32 %v1274, %v1275
    %v1277 = vrot.slane %v1276, 1
    %v1278 = vadd.f32 %v1276, %v1277
    %v1279 = vsel %vm358, %v1251, 0.0
    %v1280 = vrot.slane %v1279, 4
    %v1281 = vadd.f32 %v1279, %v1280
    %v1282 = vrot.slane %v1281, 2
    %v1283 = vadd.f32 %v1281, %v1282
    %v1284 = vrot.slane %v1283, 1
    %v1285 = vadd.f32 %v1283, %v1284
    %v1286 = vsel %vm358, %v1252, 0.0
    %v1287 = vrot.slane %v1286, 4
    %v1288 = vadd.f32 %v1286, %v1287
    %v1289 = vrot.slane %v1288, 2
    %v1290 = vadd.f32 %v1288, %v1289
    %v1291 = vrot.slane %v1290, 1
    %v1292 = vadd.f32 %v1290, %v1291
    %v1293 = vsel %vm358, %v1253, 0.0
    %v1294 = vrot.slane %v1293, 4
    %v1295 = vadd.f32 %v1293, %v1294
    %v1296 = vrot.slane %v1295, 2
    %v1297 = vadd.f32 %v1295, %v1296
    %v1298 = vrot.slane %v1297, 1
    %v1299 = vadd.f32 %v1297, %v1298
    %v1300 = vsel %vm358, %v1254, 0.0
    %v1301 = vrot.slane %v1300, 4
    %v1302 = vadd.f32 %v1300, %v1301
    %v1303 = vrot.slane %v1302, 2
    %v1304 = vadd.f32 %v1302, %v1303
    %v1305 = vrot.slane %v1304, 1
    %v1306 = vadd.f32 %v1304, %v1305
    %v1307 = vsel %vm358, %v1255, 0.0
    %v1308 = vrot.slane %v1307, 4
    %v1309 = vadd.f32 %v1307, %v1308
    %v1310 = vrot.slane %v1309, 2
    %v1311 = vadd.f32 %v1309, %v1310
    %v1312 = vrot.slane %v1311, 1
    %v1313 = vadd.f32 %v1311, %v1312
    %v1314 = vsel %vm358, %v1256, 0.0
    %v1315 = vrot.slane %v1314, 4
    %v1316 = vadd.f32 %v1314, %v1315
    %v1317 = vrot.slane %v1316, 2
    %v1318 = vadd.f32 %v1316, %v1317
    %v1319 = vrot.slane %v1318, 1
    %v1320 = vadd.f32 %v1318, %v1319
    %v1321 = vsel %vm358, %v1257, 0.0
    %v1322 = vrot.slane %v1321, 4
    %v1323 = vadd.f32 %v1321, %v1322
    %v1324 = vrot.slane %v1323, 2
    %v1325 = vadd.f32 %v1323, %v1324
    %v1326 = vrot.slane %v1325, 1
    %v1327 = vadd.f32 %v1325, %v1326
    %v1328 = vsel %vm358, %v1258, 0.0
    %v1329 = vrot.slane %v1328, 4
    %v1330 = vadd.f32 %v1328, %v1329
    %v1331 = vrot.slane %v1330, 2
    %v1332 = vadd.f32 %v1330, %v1331
    %v1333 = vrot.slane %v1332, 1
    %v1334 = vadd.f32 %v1332, %v1333
    %v1335 = vsel %vm358, %v1259, 0.0
    %v1336 = vrot.slane %v1335, 4
    %v1337 = vadd.f32 %v1335, %v1336
    %v1338 = vrot.slane %v1337, 2
    %v1339 = vadd.f32 %v1337, %v1338
    %v1340 = vrot.slane %v1339, 1
    %v1341 = vadd.f32 %v1339, %v1340
    %v1342 = vsel %vm358, %v1260, 0.0
    %v1343 = vrot.slane %v1342, 4
    %v1344 = vadd.f32 %v1342, %v1343
    %v1345 = vrot.slane %v1344, 2
    %v1346 = vadd.f32 %v1344, %v1345
    %v1347 = vrot.slane %v1346, 1
    %v1348 = vadd.f32 %v1346, %v1347
    %v1349 = vsel %vm358, %v1261, 0.0
    %v1350 = vrot.slane %v1349, 4
    %v1351 = vadd.f32 %v1349, %v1350
    %v1352 = vrot.slane %v1351, 2
    %v1353 = vadd.f32 %v1351, %v1352
    %v1354 = vrot.slane %v1353, 1
    %v1355 = vadd.f32 %v1353, %v1354
    %v1356 = vsel %vm358, %v1262, 0.0
    %v1357 = vrot.slane %v1356, 4
    %v1358 = vadd.f32 %v1356, %v1357
    %v1359 = vrot.slane %v1358, 2
    %v1360 = vadd.f32 %v1358, %v1359
    %v1361 = vrot.slane %v1360, 1
    %v1362 = vadd.f32 %v1360, %v1361
    %v1363 = vsel %vm358, %v1263, 0.0
    %v1364 = vrot.slane %v1363, 4
    %v1365 = vadd.f32 %v1363, %v1364
    %v1366 = vrot.slane %v1365, 2
    %v1367 = vadd.f32 %v1365, %v1366
    %v1368 = vrot.slane %v1367, 1
    %v1369 = vadd.f32 %v1367, %v1368
    %v1370 = vsel %vm358, %v1264, 0.0
    %v1371 = vrot.slane %v1370, 4
    %v1372 = vadd.f32 %v1370, %v1371
    %v1373 = vrot.slane %v1372, 2
    %v1374 = vadd.f32 %v1372, %v1373
    %v1375 = vrot.slane %v1374, 1
    %v1376 = vadd.f32 %v1374, %v1375
    %v1377 = vld [vmem:[#allocation7] sm:$0xff]
    %v1378 = vld [vmem:[#allocation7 + $0x8] sm:$0xff]
    %v1379 = vld [vmem:[#allocation7 + $0x10] sm:$0xff]
    %v1380 = vld [vmem:[#allocation7 + $0x18] sm:$0xff]
    %v1381 = vld [vmem:[%s4] sm:$0x1]
    %v1383 = vlaneseq
    %v1384 = vshrl.u32 %v1383, 7
    %v1385 = vsub.s32 0, %v1384
    %v1386 = vrot.slane %v1381, %v1385
    %vm1404 = vcmask 1041409
    %v1405 = vsel %vm1404, %v1278, %v1271
    %vm1406 = vcmask 1042434
    %v1407 = vsel %vm1406, %v1285, %v1405
    %vm1408 = vcmask 1043459
    %v1409 = vsel %vm1408, %v1292, %v1407
    %vm1410 = vcmask 1044484
    %v1411 = vsel %vm1410, %v1299, %v1409
    %vm1412 = vcmask 1045509
    %v1413 = vsel %vm1412, %v1306, %v1411
    %vm1414 = vcmask 1046534
    %v1415 = vsel %vm1414, %v1313, %v1413
    %vm1416 = vcmask 1047559
    %v1417 = vsel %vm1416, %v1320, %v1415
    %v1418 = vsel %vm1404, %v1334, %v1327
    %v1419 = vsel %vm1406, %v1341, %v1418
    %v1420 = vsel %vm1408, %v1348, %v1419
    %v1421 = vsel %vm1410, %v1355, %v1420
    %v1422 = vsel %vm1412, %v1362, %v1421
    %v1423 = vsel %vm1414, %v1369, %v1422
    %v1424 = vsel %vm1416, %v1376, %v1423
    %v1425 = vsel %vm358, %v1417, 0
    %v1427 = vsel %vm358, %v1424, 0
    %1429 = vmatprep.subr.mxu0 0.0
    %1430 = vmatpush1.msra.mxu0 0.0
    %1431 = vmatprep.subr.mxu0 0.0
    %1432 = vmatpush1.msra.mxu0 0.0
    %1433 = vmatprep.subr.mxu0 0.0
    %1434 = vmatpush1.msra.mxu0 0.0
    %1435 = vmatprep.subr.mxu0 0.0
    %1436 = vmatpush1.msra.mxu0 0.0
    %1437 = vmatprep.subr.mxu0 0.0
    %1438 = vmatpush1.msra.mxu0 0.0
    %1439 = vmatprep.subr.mxu0 0.0
    %1440 = vmatpush1.msra.mxu0 0.0
    %1441 = vmatprep.subr.mxu0 0.0
    %1442 = vmatpush1.msra.mxu0 0.0
    %1443 = vmatprep.subr.mxu0 0.0
    %1444 = vmatpush1.msra.mxu0 0.0
    %1445 = vmatprep.subr.mxu0 0.0
    %1446 = vmatpush1.msra.mxu0 0.0
    %1447 = vmatprep.subr.mxu0 0.0
    %1448 = vmatpush1.msra.mxu0 0.0
    %1449 = vmatprep.subr.mxu0 0.0
    %1450 = vmatpush1.msra.mxu0 0.0
    %1451 = vmatprep.subr.mxu0 0.0
    %1452 = vmatpush1.msra.mxu0 0.0
    %1453 = vmatprep.subr.mxu0 0.0
    %1454 = vmatpush1.msra.mxu0 %v1380
    %1455 = vmatprep.subr.mxu0 0.0
    %1456 = vmatpush1.msra.mxu0 %v1379
    %1457 = vmatprep.subr.mxu0 0.0
    %1458 = vmatpush1.msra.mxu0 %v1378
    %1459 = vmatprep.subr.mxu0 0.0
    %1460 = vmatpush1.msra.mxu0 %v1377
    %1461 = vmatprep.subr.mxu0 0.0
    %1462 = vmatpush2.msra.mxu0 0.0
    %1463 = vmatprep.subr.mxu0 0.0
    %1464 = vmatpush2.msra.mxu0 0.0
    %1465 = vmatprep.subr.mxu0 0.0
    %1466 = vmatpush2.msra.mxu0 0.0
    %1467 = vmatprep.subr.mxu0 0.0
    %1468 = vmatpush2.msra.mxu0 0.0
    %1469 = vmatprep.subr.mxu0 0.0
    %1470 = vmatpush2.msra.mxu0 0.0
    %1471 = vmatprep.subr.mxu0 0.0
    %1472 = vmatpush2.msra.mxu0 0.0
    %1473 = vmatprep.subr.mxu0 0.0
    %1474 = vmatpush2.msra.mxu0 0.0
    %1475 = vmatprep.subr.mxu0 0.0
    %1476 = vmatpush2.msra.mxu0 0.0
    %1477 = vmatprep.subr.mxu0 0.0
    %1478 = vmatpush2.msra.mxu0 0.0
    %1479 = vmatprep.subr.mxu0 0.0
    %1480 = vmatpush2.msra.mxu0 0.0
    %1481 = vmatprep.subr.mxu0 0.0
    %1482 = vmatpush2.msra.mxu0 0.0
    %1483 = vmatprep.subr.mxu0 0.0
    %1484 = vmatpush2.msra.mxu0 0.0
    %1485 = vmatprep.subr.mxu0 0.0
    %1486 = vmatpush2.msra.mxu0 0.0
    %1487 = vmatprep.subr.mxu0 0.0
    %1488 = vmatpush2.msra.mxu0 0.0
    %1489 = vmatprep.subr.mxu0 0.0
    %1490 = vmatpush2.msra.mxu0 0.0
    %1491 = vmatprep.subr.mxu0 0.0
    %1492 = vmatpush2.msra.mxu0 0.0
    %1493 = vmatprep.mubr.f32.mxu0 0.0
    %1494 = vmatmul.mubr.f32.gmra.mxu0 %v1425
    %v1495 = vpop.f32.mrf.mxu0
    %v1496 = vadd.f32 %v1386, %v1495
    %v1497 = vpop.f32.mrf.mxu0
    %1498 = vmatprep.mubr.f32.mxu0 0.0
    %1499 = vmatmul.mubr.f32.gmra.mxu0 %v1427
    %v1500 = vpop.f32.mrf.mxu0
    %v1501 = vadd.f32 %v1386, %v1500
    %v1502 = vpop.f32.mrf.mxu0
    %1503 = vdwg.mxu0
    %1504 = vst.msk [vmem:[#allocation8] sm:$0xff] %vm358, %v1496
    %1505 = vst.msk [vmem:[#allocation8 + $0x8] sm:$0xff] %vm358, %v1501
    // Predicated region
    $region34: #{tpu_custom_call.1} parent=1 // pred_check
      _
    $region35: #{tpu_custom_call.1} parent=1 // pred_check_branch
      %1507 = sbr.rel (0) target = $region37
    $region36: #{tpu_custom_call.1} parent=1 // pred_region
      %s1509 = ssub.s32 256, 256
      %1510 = vsyncadd [#allocation4], %s1509
      %s1511 = sshll.u32 [#allocation8], 4
      %s1512 = int_to_ptr.vmem [resolvable:$true] %s1511
      %1517 = dma.vmem_to_hbm [thread:$0]  %s1512, 256, %s5, [#allocation4], 128, 128, 8
    $region37: #{tpu_custom_call.1} parent=1 // pred_fallthru
      _
    // Predicated region
    $region38: #{tpu_custom_call.1} parent=1 // pred_check
      _
    $region39: #{tpu_custom_call.1} parent=1 // pred_check_branch
      %1519 = sbr.rel (0) target = $region41
    $region40: #{tpu_custom_call.1} parent=1 // pred_region
      %1520 = dma.done [#allocation4], 256
    $region41: #{tpu_custom_call.1} parent=1 // pred_fallthru
      _
    %1521 = vsyncpa [#allocation3], 1
    %1522 = vsyncpa [#allocation6], 1
    %1523 = vsyncpa [#allocation4], 1

</llo_original>
